<compile_context>
chip_gen: v6e
topology: v6e:2x2x1
jax: 0.10.0
libtpu: 0.0.40
codegen_flags: <defaults>
</compile_context>

<pallas_src>
import jax
import jax.numpy as jnp
from jax import lax
from jax.experimental import pallas as pl
from jax.experimental.pallas import tpu as pltpu


def _round_up(x, m):
    return (x + m - 1) // m * m


def lstm_fc_kernel(emb_ref, wih_ref, whh_ref, b_ref, fcw_ref, fcb_ref,
                   out_ref, gx_ref, h_ref, c_ref):
    """One (batch-block, time-chunk) grid step of the LSTM + final FC/sigmoid.

    emb_ref : (Bb, tT, Ep)  bf16  masked embeddings, batch-major (no HBM transpose)
    wih_ref : (Ep, 4Hp)     bf16  input->gate weights, gate order (i,f,o,g)
    whh_ref : (Hp, 4Hp)     bf16  hidden->gate weights, gate order (i,f,o,g)
    b_ref   : (1, 4Hp)      f32   combined bias (b_ih + b_hh)
    fcw_ref : (Hp, Op)      bf16  fc weight transposed
    fcb_ref : (1, Op)       f32   fc bias
    out_ref : (Bb, Op)      f32   sigmoid(fc(h_T)), written on the last chunk
    gx_ref  : (tT*Bb, 4Hp)  bf16  VMEM scratch: hoisted input projections
    h_ref/c_ref : (Bb, Hp)  f32   VMEM scratch: persistent recurrent state
    """
    t_chunk = pl.program_id(1)
    n_chunks = pl.num_programs(1)
    Bb, tT, Ep = emb_ref.shape
    Hp = h_ref.shape[1]

    # ---- init recurrent state at the start of each batch block's time sweep
    @pl.when(t_chunk == 0)
    def _():
        h_ref[...] = jnp.zeros_like(h_ref)
        c_ref[...] = jnp.zeros_like(c_ref)

    # ---- hoisted, time-parallel input projection: one MXU matmul per chunk.
    # Time-major rearrangement done in VMEM (XLU slot) instead of an extra
    # HBM read+write pass in the wrapper.
    emb_tm = jnp.transpose(emb_ref[...], (1, 0, 2)).reshape(tT * Bb, Ep)
    gx = jnp.dot(emb_tm, wih_ref[...], preferred_element_type=jnp.float32)
    gx_ref[...] = gx.astype(gx_ref.dtype)       # single contiguous unmasked store

    whh = whh_ref[...]                           # hoist weight loads out of loop
    bias = b_ref[...]

    def step(s, carry):
        h, c = carry                             # f32 register-carried state
        row = pl.multiple_of(s * Bb, Bb)
        gx_s = gx_ref[pl.ds(row, Bb), :].astype(jnp.float32)
        gates = gx_s + bias + jnp.dot(h.astype(whh.dtype), whh,
                                      preferred_element_type=jnp.float32)
        # Gate order (i,f,o,g): one lane-aligned sigmoid slab + one tanh slab.
        sg = jax.nn.sigmoid(gates[:, :3 * Hp])
        gg = jnp.tanh(gates[:, 3 * Hp:])
        i_g, f_g, o_g = sg[:, :Hp], sg[:, Hp:2 * Hp], sg[:, 2 * Hp:]
        c_new = f_g * c + i_g * gg
        h_new = o_g * jnp.tanh(c_new)
        return h_new, c_new

    # Partial unroll: LLO scheduling visibility without vreg-spill pressure.
    h_last, c_last = lax.fori_loop(0, tT, step, (h_ref[...], c_ref[...]),
                                   unroll=min(tT, 8))
    h_ref[...] = h_last
    c_ref[...] = c_last

    # ---- last chunk: fc(h_T) -> sigmoid; lane-dense (Bb, Op) store ----
    @pl.when(t_chunk == n_chunks - 1)
    def _():
        logits = jnp.dot(h_last.astype(fcw_ref.dtype), fcw_ref[...],
                         preferred_element_type=jnp.float32) + fcb_ref[...]
        out_ref[...] = jax.nn.sigmoid(logits).astype(out_ref.dtype)


def init_params(key, vocab_size, embed_size, hidden_size, output_size):
    """Deterministic synthetic parameters (PyTorch-like uniform init)."""
    ks = jax.random.split(key, 7)
    k_lstm = 1.0 / jnp.sqrt(hidden_size)
    k_fc = 1.0 / jnp.sqrt(hidden_size)
    return dict(
        embedding=jax.random.normal(ks[0], (vocab_size, embed_size),
                                    jnp.float32),
        # PyTorch shapes: weight_ih (4H, E), weight_hh (4H, H), biases (4H,)
        w_ih=jax.random.uniform(ks[1], (4 * hidden_size, embed_size),
                                jnp.float32, -k_lstm, k_lstm),
        w_hh=jax.random.uniform(ks[2], (4 * hidden_size, hidden_size),
                                jnp.float32, -k_lstm, k_lstm),
        b_ih=jax.random.uniform(ks[3], (4 * hidden_size,),
                                jnp.float32, -k_lstm, k_lstm),
        b_hh=jax.random.uniform(ks[4], (4 * hidden_size,),
                                jnp.float32, -k_lstm, k_lstm),
        # fc: weight (O, H), bias (O,)
        fc_w=jax.random.uniform(ks[5], (output_size, hidden_size),
                                jnp.float32, -k_fc, k_fc),
        fc_b=jax.random.uniform(ks[6], (output_size,),
                                jnp.float32, -k_fc, k_fc),
    )


def lstm_model_forward(params, input_ids, attention_mask, *,
                       time_chunk=8, batch_block=8):
    """Embedding gather + mask fusion + gate reorder/padding in the wrapper,
    then one grid-tiled Pallas call for LSTM recurrence + FC + sigmoid."""
    B, T = input_ids.shape
    E = params["embedding"].shape[1]
    H = params["w_hh"].shape[1]
    O = params["fc_w"].shape[0]

    # -------- padded, MXU / lane-friendly sizes --------
    Hp = _round_up(H, 128)                 # lane-aligned gate slabs
    Ep = _round_up(E, 128)
    Op = _round_up(O, 128)                 # lane-dense output store
    Bb = batch_block                       # multiple of 8 (sublane)
    Bp = _round_up(max(B, Bb), Bb)
    # time chunk must be a multiple of 8 (sublane rule on the emb block) or T
    tT = time_chunk if (T % time_chunk == 0 and time_chunk % 8 == 0) else T
    nB, nT = Bp // Bb, T // tT

    # -------- embedding lookup (gather) + mask fused here; kept batch-major
    # (B,T,E) so no extra HBM transpose pass before the kernel DMAs it -----
    # TODO(synk): the embedding gather itself stays in XLA (data-dependent
    # row gather; a Pallas version would need a manual DMA-gather kernel).
    embedded = jnp.take(params["embedding"], input_ids, axis=0)        # (B,T,E)
    embedded = embedded * attention_mask[..., None].astype(embedded.dtype)
    emb = jnp.zeros((Bp, T, Ep), jnp.bfloat16).at[:B, :, :E].set(
        embedded.astype(jnp.bfloat16))

    # -------- gate reorder (PyTorch i,f,g,o -> kernel i,f,o,g) + padding ----
    def ifog(w):
        return jnp.concatenate([w[:2 * H], w[3 * H:4 * H], w[2 * H:3 * H]],
                               axis=0)

    def gate_pad(w, cols_p):   # (4H, C) -> (4Hp, cols_p), per-gate row padding
        out = jnp.zeros((4 * Hp, cols_p), w.dtype)
        for g in range(4):
            out = out.at[g * Hp:g * Hp + H, :w.shape[1]].set(
                w[g * H:(g + 1) * H])
        return out

    wih_t = gate_pad(ifog(params["w_ih"]), Ep).T.astype(jnp.bfloat16)  # (Ep,4Hp)
    whh_t = gate_pad(ifog(params["w_hh"]), Hp).T.astype(jnp.bfloat16)  # (Hp,4Hp)

    b_r = ifog(params["b_ih"] + params["b_hh"])
    bias = jnp.zeros((1, 4 * Hp), jnp.float32)
    for g in range(4):
        bias = bias.at[0, g * Hp:g * Hp + H].set(b_r[g * H:(g + 1) * H])

    fcw_t = (jnp.zeros((Hp, Op), jnp.float32)
             .at[:H, :O].set(params["fc_w"].T)).astype(jnp.bfloat16)   # (Hp,Op)
    fcb = jnp.zeros((1, Op), jnp.float32).at[0, :O].set(params["fc_b"])

    cost = pl.CostEstimate(
        flops=2 * T * Bp * Ep * 4 * Hp + 2 * T * Bp * Hp * 4 * Hp
              + 2 * Bp * Hp * Op,
        transcendentals=5 * T * Bp * Hp,
        bytes_accessed=(emb.size + wih_t.size + whh_t.size + fcw_t.size) * 2
                       + Bp * Op * 4)

    out_p = pl.pallas_call(
        lstm_fc_kernel,
        out_shape=jax.ShapeDtypeStruct((Bp, Op), jnp.float32),
        grid_spec=pltpu.PrefetchScalarGridSpec(
            num_scalar_prefetch=0,
            grid=(nB, nT),
            in_specs=[
                pl.BlockSpec((Bb, tT, Ep), lambda b, t: (b, t, 0)),   # emb
                pl.BlockSpec((Ep, 4 * Hp), lambda b, t: (0, 0)),      # W_ih^T
                pl.BlockSpec((Hp, 4 * Hp), lambda b, t: (0, 0)),      # W_hh^T
                pl.BlockSpec((1, 4 * Hp), lambda b, t: (0, 0)),       # bias
                pl.BlockSpec((Hp, Op), lambda b, t: (0, 0)),          # fc_w^T
                pl.BlockSpec((1, Op), lambda b, t: (0, 0)),           # fc_b
            ],
            out_specs=pl.BlockSpec((Bb, Op), lambda b, t: (b, 0)),
            scratch_shapes=[
                pltpu.VMEM((tT * Bb, 4 * Hp), jnp.bfloat16),  # hoisted gx (bf16)
                pltpu.VMEM((Bb, Hp), jnp.float32),            # h state
                pltpu.VMEM((Bb, Hp), jnp.float32),            # c state
            ]),
        compiler_params=pltpu.CompilerParams(
            dimension_semantics=("parallel", "arbitrary"),
            vmem_limit_bytes=64 * 1024 * 1024),
        cost_estimate=cost,
    )(emb, wih_t, whh_t, bias, fcw_t, fcb)

    return out_p[:B, :O]


def reference_forward(params, input_ids, attention_mask):
    """Pure-JAX f32 reference reproducing the PyTorch forward semantics."""
    H = params["w_hh"].shape[1]
    embedded = jnp.take(params["embedding"], input_ids, axis=0)
    embedded = embedded * attention_mask[..., None].astype(embedded.dtype)
    B, T, _ = embedded.shape

    def step(carry, x_t):
        h, c = carry
        gates = (x_t @ params["w_ih"].T + h @ params["w_hh"].T
                 + params["b_ih"] + params["b_hh"])
        i_g = jax.nn.sigmoid(gates[:, 0 * H:1 * H])
        f_g = jax.nn.sigmoid(gates[:, 1 * H:2 * H])
        g_g = jnp.tanh(gates[:, 2 * H:3 * H])
        o_g = jax.nn.sigmoid(gates[:, 3 * H:4 * H])
        c = f_g * c + i_g * g_g
        h = o_g * jnp.tanh(c)
        return (h, c), None

    h0 = jnp.zeros((B, H), jnp.float32)
    (h_last, _), _ = lax.scan(step, (h0, h0),
                              jnp.transpose(embedded, (1, 0, 2)))
    logits = h_last @ params["fc_w"].T + params["fc_b"]
    return jax.nn.sigmoid(logits)


if __name__ == "__main__":
    vocab_size, embed_size, hidden_size, output_size = 50, 16, 32, 4
    batch, seq = 2, 16          # seq=16 -> two time chunks of 8 (pipelined)

    key = jax.random.PRNGKey(0)
    k_params, k_ids = jax.random.split(key)
    params = init_params(k_params, vocab_size, embed_size, hidden_size,
                         output_size)

    input_ids = jax.random.randint(k_ids, (batch, seq), 0, vocab_size,
                                   dtype=jnp.int32)
    attention_mask = jnp.stack([
        (jnp.arange(seq) < 12).astype(jnp.float32),   # row 0: 12 valid tokens
        jnp.ones((seq,), jnp.float32),                # row 1: all valid
    ])

    out = lstm_model_forward(params, input_ids, attention_mask)
    out = jax.block_until_ready(out)

    ref = reference_forward(params, input_ids, attention_mask)
    assert out.shape == (batch, output_size)
    # bf16 matmul operands / bf16 gx scratch vs f32 reference -> loosened tol.
    assert jnp.allclose(out, ref, atol=2e-2, rtol=2e-2), (out, ref)

    print("KERNEL_OK")
</pallas_src>

<mosaic_0001>
module attributes {stable_mosaic.version = 11 : i64} {
  func.func @lstm_fc_kernel(%arg0: i32, %arg1: i32, %arg2: memref<8x8x128xbf16, #tpu.memory_space<vmem>>, %arg3: memref<128x512xbf16, #tpu.memory_space<vmem>>, %arg4: memref<128x512xbf16, #tpu.memory_space<vmem>>, %arg5: memref<1x512xf32, #tpu.memory_space<vmem>>, %arg6: memref<128x128xbf16, #tpu.memory_space<vmem>>, %arg7: memref<1x128xf32, #tpu.memory_space<vmem>>, %arg8: memref<8x128xf32, #tpu.memory_space<vmem>>, %arg9: memref<64x512xbf16, #tpu.memory_space<vmem>>, %arg10: memref<8x128xf32, #tpu.memory_space<vmem>>, %arg11: memref<8x128xf32, #tpu.memory_space<vmem>>) attributes {dimension_semantics = [#tpu.dimension_semantics<parallel>, #tpu.dimension_semantics<arbitrary>], iteration_bounds = array<i64: 1, 2>, scalar_prefetch = 0 : i64, scratch_operands = 3 : i64, tpu.core_type = #tpu.core_type<tc>, window_params = [{transform_indices = @transform_0, window_bounds = array<i64: 8, 8, 128>}, {pipeline_mode = #tpu.pipeline_mode<synchronous>, transform_indices = @transform_1, window_bounds = array<i64: 128, 512>}, {pipeline_mode = #tpu.pipeline_mode<synchronous>, transform_indices = @transform_2, window_bounds = array<i64: 128, 512>}, {pipeline_mode = #tpu.pipeline_mode<synchronous>, transform_indices = @transform_3, window_bounds = array<i64: 1, 512>}, {pipeline_mode = #tpu.pipeline_mode<synchronous>, transform_indices = @transform_4, window_bounds = array<i64: 128, 128>}, {pipeline_mode = #tpu.pipeline_mode<synchronous>, transform_indices = @transform_5, window_bounds = array<i64: 1, 128>}, {transform_indices = @transform_6, window_bounds = array<i64: 8, 128>}]} {
    %c0_i32 = arith.constant 0 : i32
    %0 = arith.cmpi eq, %arg1, %c0_i32 : i32
    %1 = arith.extui %0 : i1 to i32
    %c0_i32_0 = arith.constant 0 : i32
    %2 = arith.cmpi ne, %1, %c0_i32_0 : i32
    scf.if %2 {
      %cst_54 = arith.constant 0.000000e+00 : f32
      %227 = vector.broadcast %cst_54 : f32 to vector<8x128xf32>
      %c0_55 = arith.constant 0 : index
      %c0_56 = arith.constant 0 : index
      %228 = vector.load %arg10[%c0_55, %c0_56] : memref<8x128xf32, #tpu.memory_space<vmem>>, vector<8x128xf32>
      tpu.vector_store %arg10[%c0_55, %c0_56], %227 {strides = array<i32>} : memref<8x128xf32, #tpu.memory_space<vmem>>, vector<8x128xf32>,
      %cst_57 = arith.constant 0.000000e+00 : f32
      %229 = vector.broadcast %cst_57 : f32 to vector<8x128xf32>
      %c0_58 = arith.constant 0 : index
      %c0_59 = arith.constant 0 : index
      %230 = vector.load %arg11[%c0_58, %c0_59] : memref<8x128xf32, #tpu.memory_space<vmem>>, vector<8x128xf32>
      tpu.vector_store %arg11[%c0_58, %c0_59], %229 {strides = array<i32>} : memref<8x128xf32, #tpu.memory_space<vmem>>, vector<8x128xf32>,
    } else {
    }
    %c0 = arith.constant 0 : index
    %c0_1 = arith.constant 0 : index
    %c0_2 = arith.constant 0 : index
    %3 = vector.load %arg2[%c0, %c0_1, %c0_2] : memref<8x8x128xbf16, #tpu.memory_space<vmem>>, vector<8x8x128xbf16>
    %4 = tpu.transpose %3, [1, 0, 2] : vector<8x8x128xbf16> -> vector<8x8x128xbf16>
    %5 = vector.shape_cast %4 : vector<8x8x128xbf16> to vector<64x128xbf16>
    %c0_3 = arith.constant 0 : index
    %c0_4 = arith.constant 0 : index
    %6 = vector.load %arg3[%c0_3, %c0_4] : memref<128x512xbf16, #tpu.memory_space<vmem>>, vector<128x512xbf16>
    %cst = arith.constant dense<0.000000e+00> : vector<64x512xf32>
    %7 = tpu.matmul %5, %6, %cst {dimension_numbers = #tpu.dot_dimension_numbers<[1], [0], [0], [1], [0, 0, 1, 1], [], []>} : vector<64x128xbf16>, vector<128x512xbf16>, vector<64x512xf32> -> vector<64x512xf32>
    %8 = arith.truncf %7 : vector<64x512xf32> to vector<64x512xbf16>
    %c0_5 = arith.constant 0 : index
    %c0_6 = arith.constant 0 : index
    %9 = vector.load %arg9[%c0_5, %c0_6] : memref<64x512xbf16, #tpu.memory_space<vmem>>, vector<64x512xbf16>
    tpu.vector_store %arg9[%c0_5, %c0_6], %8 {strides = array<i32>} : memref<64x512xbf16, #tpu.memory_space<vmem>>, vector<64x512xbf16>,
    %c0_7 = arith.constant 0 : index
    %c0_8 = arith.constant 0 : index
    %10 = vector.load %arg4[%c0_7, %c0_8] : memref<128x512xbf16, #tpu.memory_space<vmem>>, vector<128x512xbf16>
    %c0_9 = arith.constant 0 : index
    %c0_10 = arith.constant 0 : index
    %11 = vector.load %arg5[%c0_9, %c0_10] : memref<1x512xf32, #tpu.memory_space<vmem>>, vector<1x512xf32>
    %c0_11 = arith.constant 0 : index
    %c0_12 = arith.constant 0 : index
    %12 = vector.load %arg10[%c0_11, %c0_12] : memref<8x128xf32, #tpu.memory_space<vmem>>, vector<8x128xf32>
    %c0_13 = arith.constant 0 : index
    %c0_14 = arith.constant 0 : index
    %13 = vector.load %arg11[%c0_13, %c0_14] : memref<8x128xf32, #tpu.memory_space<vmem>>, vector<8x128xf32>
    %c0_i32_15 = arith.constant 0 : i32
    %c8_i32 = arith.constant 8 : i32
    %14 = arith.muli %c0_i32_15, %c8_i32 : i32
    %15 = tpu.assume_multiple %14, 8 : i32
    %16 = arith.index_cast %15 : i32 to index
    %c0_16 = arith.constant 0 : index
    %17 = vector.load %arg9[%16, %c0_16] : memref<64x512xbf16, #tpu.memory_space<vmem>>, vector<8x512xbf16>
    %18 = arith.extf %17 : vector<8x512xbf16> to vector<8x512xf32>
    %19 = vector.broadcast %11 : vector<1x512xf32> to vector<8x512xf32>
    %20 = arith.addf %18, %19 : vector<8x512xf32>
    %21 = arith.truncf %12 : vector<8x128xf32> to vector<8x128xbf16>
    %cst_17 = arith.constant dense<0.000000e+00> : vector<8x512xf32>
    %22 = tpu.matmul %21, %10, %cst_17 {dimension_numbers = #tpu.dot_dimension_numbers<[1], [0], [0], [1], [0, 0, 1, 1], [], []>} : vector<8x128xbf16>, vector<128x512xbf16>, vector<8x512xf32> -> vector<8x512xf32>
    %23 = arith.addf %20, %22 : vector<8x512xf32>
    %24 = vector.extract_strided_slice %23 {offsets = [0, 0], sizes = [8, 384], strides = [1, 1]} : vector<8x512xf32> to vector<8x384xf32>
    %25 = arith.negf %24 : vector<8x384xf32>
    %26 = math.exp %25 : vector<8x384xf32>
    %cst_18 = arith.constant 1.000000e+00 : f32
    %27 = vector.broadcast %cst_18 : f32 to vector<8x384xf32>
    %28 = arith.addf %27, %26 : vector<8x384xf32>
    %29 = arith.divf %27, %28 : vector<8x384xf32>
    %30 = vector.extract_strided_slice %23 {offsets = [0, 384], sizes = [8, 128], strides = [1, 1]} : vector<8x512xf32> to vector<8x128xf32>
    %31 = math.tanh %30 : vector<8x128xf32>
    %32 = vector.extract_strided_slice %29 {offsets = [0, 0], sizes = [8, 128], strides = [1, 1]} : vector<8x384xf32> to vector<8x128xf32>
    %33 = vector.extract_strided_slice %29 {offsets = [0, 128], sizes = [8, 128], strides = [1, 1]} : vector<8x384xf32> to vector<8x128xf32>
    %34 = vector.extract_strided_slice %29 {offsets = [0, 256], sizes = [8, 128], strides = [1, 1]} : vector<8x384xf32> to vector<8x128xf32>
    %35 = arith.mulf %33, %13 : vector<8x128xf32>
    %36 = arith.mulf %32, %31 : vector<8x128xf32>
    %37 = arith.addf %35, %36 : vector<8x128xf32>
    %38 = math.tanh %37 : vector<8x128xf32>
    %39 = arith.mulf %34, %38 : vector<8x128xf32>
    %c1_i32 = arith.constant 1 : i32
    %c8_i32_19 = arith.constant 8 : i32
    %40 = arith.muli %c1_i32, %c8_i32_19 : i32
    %41 = tpu.assume_multiple %40, 8 : i32
    %42 = arith.index_cast %41 : i32 to index
    %c0_20 = arith.constant 0 : index
    %43 = vector.load %arg9[%42, %c0_20] : memref<64x512xbf16, #tpu.memory_space<vmem>>, vector<8x512xbf16>
    %44 = arith.extf %43 : vector<8x512xbf16> to vector<8x512xf32>
    %45 = vector.broadcast %11 : vector<1x512xf32> to vector<8x512xf32>
    %46 = arith.addf %44, %45 : vector<8x512xf32>
    %47 = arith.truncf %39 : vector<8x128xf32> to vector<8x128xbf16>
    %cst_21 = arith.constant dense<0.000000e+00> : vector<8x512xf32>
    %48 = tpu.matmul %47, %10, %cst_21 {dimension_numbers = #tpu.dot_dimension_numbers<[1], [0], [0], [1], [0, 0, 1, 1], [], []>} : vector<8x128xbf16>, vector<128x512xbf16>, vector<8x512xf32> -> vector<8x512xf32>
    %49 = arith.addf %46, %48 : vector<8x512xf32>
    %50 = vector.extract_strided_slice %49 {offsets = [0, 0], sizes = [8, 384], strides = [1, 1]} : vector<8x512xf32> to vector<8x384xf32>
    %51 = arith.negf %50 : vector<8x384xf32>
    %52 = math.exp %51 : vector<8x384xf32>
    %cst_22 = arith.constant 1.000000e+00 : f32
    %53 = vector.broadcast %cst_22 : f32 to vector<8x384xf32>
    %54 = arith.addf %53, %52 : vector<8x384xf32>
    %55 = arith.divf %53, %54 : vector<8x384xf32>
    %56 = vector.extract_strided_slice %49 {offsets = [0, 384], sizes = [8, 128], strides = [1, 1]} : vector<8x512xf32> to vector<8x128xf32>
    %57 = math.tanh %56 : vector<8x128xf32>
    %58 = vector.extract_strided_slice %55 {offsets = [0, 0], sizes = [8, 128], strides = [1, 1]} : vector<8x384xf32> to vector<8x128xf32>
    %59 = vector.extract_strided_slice %55 {offsets = [0, 128], sizes = [8, 128], strides = [1, 1]} : vector<8x384xf32> to vector<8x128xf32>
    %60 = vector.extract_strided_slice %55 {offsets = [0, 256], sizes = [8, 128], strides = [1, 1]} : vector<8x384xf32> to vector<8x128xf32>
    %61 = arith.mulf %59, %37 : vector<8x128xf32>
    %62 = arith.mulf %58, %57 : vector<8x128xf32>
    %63 = arith.addf %61, %62 : vector<8x128xf32>
    %64 = math.tanh %63 : vector<8x128xf32>
    %65 = arith.mulf %60, %64 : vector<8x128xf32>
    %c2_i32 = arith.constant 2 : i32
    %c8_i32_23 = arith.constant 8 : i32
    %66 = arith.muli %c2_i32, %c8_i32_23 : i32
    %67 = tpu.assume_multiple %66, 8 : i32
    %68 = arith.index_cast %67 : i32 to index
    %c0_24 = arith.constant 0 : index
    %69 = vector.load %arg9[%68, %c0_24] : memref<64x512xbf16, #tpu.memory_space<vmem>>, vector<8x512xbf16>
    %70 = arith.extf %69 : vector<8x512xbf16> to vector<8x512xf32>
    %71 = vector.broadcast %11 : vector<1x512xf32> to vector<8x512xf32>
    %72 = arith.addf %70, %71 : vector<8x512xf32>
    %73 = arith.truncf %65 : vector<8x128xf32> to vector<8x128xbf16>
    %cst_25 = arith.constant dense<0.000000e+00> : vector<8x512xf32>
    %74 = tpu.matmul %73, %10, %cst_25 {dimension_numbers = #tpu.dot_dimension_numbers<[1], [0], [0], [1], [0, 0, 1, 1], [], []>} : vector<8x128xbf16>, vector<128x512xbf16>, vector<8x512xf32> -> vector<8x512xf32>
    %75 = arith.addf %72, %74 : vector<8x512xf32>
    %76 = vector.extract_strided_slice %75 {offsets = [0, 0], sizes = [8, 384], strides = [1, 1]} : vector<8x512xf32> to vector<8x384xf32>
    %77 = arith.negf %76 : vector<8x384xf32>
    %78 = math.exp %77 : vector<8x384xf32>
    %cst_26 = arith.constant 1.000000e+00 : f32
    %79 = vector.broadcast %cst_26 : f32 to vector<8x384xf32>
    %80 = arith.addf %79, %78 : vector<8x384xf32>
    %81 = arith.divf %79, %80 : vector<8x384xf32>
    %82 = vector.extract_strided_slice %75 {offsets = [0, 384], sizes = [8, 128], strides = [1, 1]} : vector<8x512xf32> to vector<8x128xf32>
    %83 = math.tanh %82 : vector<8x128xf32>
    %84 = vector.extract_strided_slice %81 {offsets = [0, 0], sizes = [8, 128], strides = [1, 1]} : vector<8x384xf32> to vector<8x128xf32>
    %85 = vector.extract_strided_slice %81 {offsets = [0, 128], sizes = [8, 128], strides = [1, 1]} : vector<8x384xf32> to vector<8x128xf32>
    %86 = vector.extract_strided_slice %81 {offsets = [0, 256], sizes = [8, 128], strides = [1, 1]} : vector<8x384xf32> to vector<8x128xf32>
    %87 = arith.mulf %85, %63 : vector<8x128xf32>
    %88 = arith.mulf %84, %83 : vector<8x128xf32>
    %89 = arith.addf %87, %88 : vector<8x128xf32>
    %90 = math.tanh %89 : vector<8x128xf32>
    %91 = arith.mulf %86, %90 : vector<8x128xf32>
    %c3_i32 = arith.constant 3 : i32
    %c8_i32_27 = arith.constant 8 : i32
    %92 = arith.muli %c3_i32, %c8_i32_27 : i32
    %93 = tpu.assume_multiple %92, 8 : i32
    %94 = arith.index_cast %93 : i32 to index
    %c0_28 = arith.constant 0 : index
    %95 = vector.load %arg9[%94, %c0_28] : memref<64x512xbf16, #tpu.memory_space<vmem>>, vector<8x512xbf16>
    %96 = arith.extf %95 : vector<8x512xbf16> to vector<8x512xf32>
    %97 = vector.broadcast %11 : vector<1x512xf32> to vector<8x512xf32>
    %98 = arith.addf %96, %97 : vector<8x512xf32>
    %99 = arith.truncf %91 : vector<8x128xf32> to vector<8x128xbf16>
    %cst_29 = arith.constant dense<0.000000e+00> : vector<8x512xf32>
    %100 = tpu.matmul %99, %10, %cst_29 {dimension_numbers = #tpu.dot_dimension_numbers<[1], [0], [0], [1], [0, 0, 1, 1], [], []>} : vector<8x128xbf16>, vector<128x512xbf16>, vector<8x512xf32> -> vector<8x512xf32>
    %101 = arith.addf %98, %100 : vector<8x512xf32>
    %102 = vector.extract_strided_slice %101 {offsets = [0, 0], sizes = [8, 384], strides = [1, 1]} : vector<8x512xf32> to vector<8x384xf32>
    %103 = arith.negf %102 : vector<8x384xf32>
    %104 = math.exp %103 : vector<8x384xf32>
    %cst_30 = arith.constant 1.000000e+00 : f32
    %105 = vector.broadcast %cst_30 : f32 to vector<8x384xf32>
    %106 = arith.addf %105, %104 : vector<8x384xf32>
    %107 = arith.divf %105, %106 : vector<8x384xf32>
    %108 = vector.extract_strided_slice %101 {offsets = [0, 384], sizes = [8, 128], strides = [1, 1]} : vector<8x512xf32> to vector<8x128xf32>
    %109 = math.tanh %108 : vector<8x128xf32>
    %110 = vector.extract_strided_slice %107 {offsets = [0, 0], sizes = [8, 128], strides = [1, 1]} : vector<8x384xf32> to vector<8x128xf32>
    %111 = vector.extract_strided_slice %107 {offsets = [0, 128], sizes = [8, 128], strides = [1, 1]} : vector<8x384xf32> to vector<8x128xf32>
    %112 = vector.extract_strided_slice %107 {offsets = [0, 256], sizes = [8, 128], strides = [1, 1]} : vector<8x384xf32> to vector<8x128xf32>
    %113 = arith.mulf %111, %89 : vector<8x128xf32>
    %114 = arith.mulf %110, %109 : vector<8x128xf32>
    %115 = arith.addf %113, %114 : vector<8x128xf32>
    %116 = math.tanh %115 : vector<8x128xf32>
    %117 = arith.mulf %112, %116 : vector<8x128xf32>
    %c4_i32 = arith.constant 4 : i32
    %c8_i32_31 = arith.constant 8 : i32
    %118 = arith.muli %c4_i32, %c8_i32_31 : i32
    %119 = tpu.assume_multiple %118, 8 : i32
    %120 = arith.index_cast %119 : i32 to index
    %c0_32 = arith.constant 0 : index
    %121 = vector.load %arg9[%120, %c0_32] : memref<64x512xbf16, #tpu.memory_space<vmem>>, vector<8x512xbf16>
    %122 = arith.extf %121 : vector<8x512xbf16> to vector<8x512xf32>
    %123 = vector.broadcast %11 : vector<1x512xf32> to vector<8x512xf32>
    %124 = arith.addf %122, %123 : vector<8x512xf32>
    %125 = arith.truncf %117 : vector<8x128xf32> to vector<8x128xbf16>
    %cst_33 = arith.constant dense<0.000000e+00> : vector<8x512xf32>
    %126 = tpu.matmul %125, %10, %cst_33 {dimension_numbers = #tpu.dot_dimension_numbers<[1], [0], [0], [1], [0, 0, 1, 1], [], []>} : vector<8x128xbf16>, vector<128x512xbf16>, vector<8x512xf32> -> vector<8x512xf32>
    %127 = arith.addf %124, %126 : vector<8x512xf32>
    %128 = vector.extract_strided_slice %127 {offsets = [0, 0], sizes = [8, 384], strides = [1, 1]} : vector<8x512xf32> to vector<8x384xf32>
    %129 = arith.negf %128 : vector<8x384xf32>
    %130 = math.exp %129 : vector<8x384xf32>
    %cst_34 = arith.constant 1.000000e+00 : f32
    %131 = vector.broadcast %cst_34 : f32 to vector<8x384xf32>
    %132 = arith.addf %131, %130 : vector<8x384xf32>
    %133 = arith.divf %131, %132 : vector<8x384xf32>
    %134 = vector.extract_strided_slice %127 {offsets = [0, 384], sizes = [8, 128], strides = [1, 1]} : vector<8x512xf32> to vector<8x128xf32>
    %135 = math.tanh %134 : vector<8x128xf32>
    %136 = vector.extract_strided_slice %133 {offsets = [0, 0], sizes = [8, 128], strides = [1, 1]} : vector<8x384xf32> to vector<8x128xf32>
    %137 = vector.extract_strided_slice %133 {offsets = [0, 128], sizes = [8, 128], strides = [1, 1]} : vector<8x384xf32> to vector<8x128xf32>
    %138 = vector.extract_strided_slice %133 {offsets = [0, 256], sizes = [8, 128], strides = [1, 1]} : vector<8x384xf32> to vector<8x128xf32>
    %139 = arith.mulf %137, %115 : vector<8x128xf32>
    %140 = arith.mulf %136, %135 : vector<8x128xf32>
    %141 = arith.addf %139, %140 : vector<8x128xf32>
    %142 = math.tanh %141 : vector<8x128xf32>
    %143 = arith.mulf %138, %142 : vector<8x128xf32>
    %c5_i32 = arith.constant 5 : i32
    %c8_i32_35 = arith.constant 8 : i32
    %144 = arith.muli %c5_i32, %c8_i32_35 : i32
    %145 = tpu.assume_multiple %144, 8 : i32
    %146 = arith.index_cast %145 : i32 to index
    %c0_36 = arith.constant 0 : index
    %147 = vector.load %arg9[%146, %c0_36] : memref<64x512xbf16, #tpu.memory_space<vmem>>, vector<8x512xbf16>
    %148 = arith.extf %147 : vector<8x512xbf16> to vector<8x512xf32>
    %149 = vector.broadcast %11 : vector<1x512xf32> to vector<8x512xf32>
    %150 = arith.addf %148, %149 : vector<8x512xf32>
    %151 = arith.truncf %143 : vector<8x128xf32> to vector<8x128xbf16>
    %cst_37 = arith.constant dense<0.000000e+00> : vector<8x512xf32>
    %152 = tpu.matmul %151, %10, %cst_37 {dimension_numbers = #tpu.dot_dimension_numbers<[1], [0], [0], [1], [0, 0, 1, 1], [], []>} : vector<8x128xbf16>, vector<128x512xbf16>, vector<8x512xf32> -> vector<8x512xf32>
    %153 = arith.addf %150, %152 : vector<8x512xf32>
    %154 = vector.extract_strided_slice %153 {offsets = [0, 0], sizes = [8, 384], strides = [1, 1]} : vector<8x512xf32> to vector<8x384xf32>
    %155 = arith.negf %154 : vector<8x384xf32>
    %156 = math.exp %155 : vector<8x384xf32>
    %cst_38 = arith.constant 1.000000e+00 : f32
    %157 = vector.broadcast %cst_38 : f32 to vector<8x384xf32>
    %158 = arith.addf %157, %156 : vector<8x384xf32>
    %159 = arith.divf %157, %158 : vector<8x384xf32>
    %160 = vector.extract_strided_slice %153 {offsets = [0, 384], sizes = [8, 128], strides = [1, 1]} : vector<8x512xf32> to vector<8x128xf32>
    %161 = math.tanh %160 : vector<8x128xf32>
    %162 = vector.extract_strided_slice %159 {offsets = [0, 0], sizes = [8, 128], strides = [1, 1]} : vector<8x384xf32> to vector<8x128xf32>
    %163 = vector.extract_strided_slice %159 {offsets = [0, 128], sizes = [8, 128], strides = [1, 1]} : vector<8x384xf32> to vector<8x128xf32>
    %164 = vector.extract_strided_slice %159 {offsets = [0, 256], sizes = [8, 128], strides = [1, 1]} : vector<8x384xf32> to vector<8x128xf32>
    %165 = arith.mulf %163, %141 : vector<8x128xf32>
    %166 = arith.mulf %162, %161 : vector<8x128xf32>
    %167 = arith.addf %165, %166 : vector<8x128xf32>
    %168 = math.tanh %167 : vector<8x128xf32>
    %169 = arith.mulf %164, %168 : vector<8x128xf32>
    %c6_i32 = arith.constant 6 : i32
    %c8_i32_39 = arith.constant 8 : i32
    %170 = arith.muli %c6_i32, %c8_i32_39 : i32
    %171 = tpu.assume_multiple %170, 8 : i32
    %172 = arith.index_cast %171 : i32 to index
    %c0_40 = arith.constant 0 : index
    %173 = vector.load %arg9[%172, %c0_40] : memref<64x512xbf16, #tpu.memory_space<vmem>>, vector<8x512xbf16>
    %174 = arith.extf %173 : vector<8x512xbf16> to vector<8x512xf32>
    %175 = vector.broadcast %11 : vector<1x512xf32> to vector<8x512xf32>
    %176 = arith.addf %174, %175 : vector<8x512xf32>
    %177 = arith.truncf %169 : vector<8x128xf32> to vector<8x128xbf16>
    %cst_41 = arith.constant dense<0.000000e+00> : vector<8x512xf32>
    %178 = tpu.matmul %177, %10, %cst_41 {dimension_numbers = #tpu.dot_dimension_numbers<[1], [0], [0], [1], [0, 0, 1, 1], [], []>} : vector<8x128xbf16>, vector<128x512xbf16>, vector<8x512xf32> -> vector<8x512xf32>
    %179 = arith.addf %176, %178 : vector<8x512xf32>
    %180 = vector.extract_strided_slice %179 {offsets = [0, 0], sizes = [8, 384], strides = [1, 1]} : vector<8x512xf32> to vector<8x384xf32>
    %181 = arith.negf %180 : vector<8x384xf32>
    %182 = math.exp %181 : vector<8x384xf32>
    %cst_42 = arith.constant 1.000000e+00 : f32
    %183 = vector.broadcast %cst_42 : f32 to vector<8x384xf32>
    %184 = arith.addf %183, %182 : vector<8x384xf32>
    %185 = arith.divf %183, %184 : vector<8x384xf32>
    %186 = vector.extract_strided_slice %179 {offsets = [0, 384], sizes = [8, 128], strides = [1, 1]} : vector<8x512xf32> to vector<8x128xf32>
    %187 = math.tanh %186 : vector<8x128xf32>
    %188 = vector.extract_strided_slice %185 {offsets = [0, 0], sizes = [8, 128], strides = [1, 1]} : vector<8x384xf32> to vector<8x128xf32>
    %189 = vector.extract_strided_slice %185 {offsets = [0, 128], sizes = [8, 128], strides = [1, 1]} : vector<8x384xf32> to vector<8x128xf32>
    %190 = vector.extract_strided_slice %185 {offsets = [0, 256], sizes = [8, 128], strides = [1, 1]} : vector<8x384xf32> to vector<8x128xf32>
    %191 = arith.mulf %189, %167 : vector<8x128xf32>
    %192 = arith.mulf %188, %187 : vector<8x128xf32>
    %193 = arith.addf %191, %192 : vector<8x128xf32>
    %194 = math.tanh %193 : vector<8x128xf32>
    %195 = arith.mulf %190, %194 : vector<8x128xf32>
    %c7_i32 = arith.constant 7 : i32
    %c8_i32_43 = arith.constant 8 : i32
    %196 = arith.muli %c7_i32, %c8_i32_43 : i32
    %197 = tpu.assume_multiple %196, 8 : i32
    %198 = arith.index_cast %197 : i32 to index
    %c0_44 = arith.constant 0 : index
    %199 = vector.load %arg9[%198, %c0_44] : memref<64x512xbf16, #tpu.memory_space<vmem>>, vector<8x512xbf16>
    %200 = arith.extf %199 : vector<8x512xbf16> to vector<8x512xf32>
    %201 = vector.broadcast %11 : vector<1x512xf32> to vector<8x512xf32>
    %202 = arith.addf %200, %201 : vector<8x512xf32>
    %203 = arith.truncf %195 : vector<8x128xf32> to vector<8x128xbf16>
    %cst_45 = arith.constant dense<0.000000e+00> : vector<8x512xf32>
    %204 = tpu.matmul %203, %10, %cst_45 {dimension_numbers = #tpu.dot_dimension_numbers<[1], [0], [0], [1], [0, 0, 1, 1], [], []>} : vector<8x128xbf16>, vector<128x512xbf16>, vector<8x512xf32> -> vector<8x512xf32>
    %205 = arith.addf %202, %204 : vector<8x512xf32>
    %206 = vector.extract_strided_slice %205 {offsets = [0, 0], sizes = [8, 384], strides = [1, 1]} : vector<8x512xf32> to vector<8x384xf32>
    %207 = arith.negf %206 : vector<8x384xf32>
    %208 = math.exp %207 : vector<8x384xf32>
    %cst_46 = arith.constant 1.000000e+00 : f32
    %209 = vector.broadcast %cst_46 : f32 to vector<8x384xf32>
    %210 = arith.addf %209, %208 : vector<8x384xf32>
    %211 = arith.divf %209, %210 : vector<8x384xf32>
    %212 = vector.extract_strided_slice %205 {offsets = [0, 384], sizes = [8, 128], strides = [1, 1]} : vector<8x512xf32> to vector<8x128xf32>
    %213 = math.tanh %212 : vector<8x128xf32>
    %214 = vector.extract_strided_slice %211 {offsets = [0, 0], sizes = [8, 128], strides = [1, 1]} : vector<8x384xf32> to vector<8x128xf32>
    %215 = vector.extract_strided_slice %211 {offsets = [0, 128], sizes = [8, 128], strides = [1, 1]} : vector<8x384xf32> to vector<8x128xf32>
    %216 = vector.extract_strided_slice %211 {offsets = [0, 256], sizes = [8, 128], strides = [1, 1]} : vector<8x384xf32> to vector<8x128xf32>
    %217 = arith.mulf %215, %193 : vector<8x128xf32>
    %218 = arith.mulf %214, %213 : vector<8x128xf32>
    %219 = arith.addf %217, %218 : vector<8x128xf32>
    %220 = math.tanh %219 : vector<8x128xf32>
    %221 = arith.mulf %216, %220 : vector<8x128xf32>
    %c8_i32_47 = arith.constant 8 : i32
    %c0_48 = arith.constant 0 : index
    %c0_49 = arith.constant 0 : index
    %222 = vector.load %arg10[%c0_48, %c0_49] : memref<8x128xf32, #tpu.memory_space<vmem>>, vector<8x128xf32>
    tpu.vector_store %arg10[%c0_48, %c0_49], %221 {strides = array<i32>} : memref<8x128xf32, #tpu.memory_space<vmem>>, vector<8x128xf32>,
    %c0_50 = arith.constant 0 : index
    %c0_51 = arith.constant 0 : index
    %223 = vector.load %arg11[%c0_50, %c0_51] : memref<8x128xf32, #tpu.memory_space<vmem>>, vector<8x128xf32>
    tpu.vector_store %arg11[%c0_50, %c0_51], %219 {strides = array<i32>} : memref<8x128xf32, #tpu.memory_space<vmem>>, vector<8x128xf32>,
    %c1_i32_52 = arith.constant 1 : i32
    %224 = arith.cmpi eq, %arg1, %c1_i32_52 : i32
    %225 = arith.extui %224 : i1 to i32
    %c0_i32_53 = arith.constant 0 : i32
    %226 = arith.cmpi ne, %225, %c0_i32_53 : i32
    scf.if %226 {
      %227 = arith.truncf %221 : vector<8x128xf32> to vector<8x128xbf16>
      %c0_54 = arith.constant 0 : index
      %c0_55 = arith.constant 0 : index
      %228 = vector.load %arg6[%c0_54, %c0_55] : memref<128x128xbf16, #tpu.memory_space<vmem>>, vector<128x128xbf16>
      %cst_56 = arith.constant dense<0.000000e+00> : vector<8x128xf32>
      %229 = tpu.matmul %227, %228, %cst_56 {dimension_numbers = #tpu.dot_dimension_numbers<[1], [0], [0], [1], [0, 0, 1, 1], [], []>} : vector<8x128xbf16>, vector<128x128xbf16>, vector<8x128xf32> -> vector<8x128xf32>
      %c0_57 = arith.constant 0 : index
      %c0_58 = arith.constant 0 : index
      %230 = vector.load %arg7[%c0_57, %c0_58] : memref<1x128xf32, #tpu.memory_space<vmem>>, vector<1x128xf32>
      %231 = vector.broadcast %230 : vector<1x128xf32> to vector<8x128xf32>
      %232 = arith.addf %229, %231 : vector<8x128xf32>
      %233 = arith.negf %232 : vector<8x128xf32>
      %234 = math.exp %233 : vector<8x128xf32>
      %cst_59 = arith.constant 1.000000e+00 : f32
      %235 = vector.broadcast %cst_59 : f32 to vector<8x128xf32>
      %236 = arith.addf %235, %234 : vector<8x128xf32>
      %237 = arith.divf %235, %236 : vector<8x128xf32>
      %c0_60 = arith.constant 0 : index
      %c0_61 = arith.constant 0 : index
      %238 = vector.load %arg8[%c0_60, %c0_61] : memref<8x128xf32, #tpu.memory_space<vmem>>, vector<8x128xf32>
      tpu.vector_store %arg8[%c0_60, %c0_61], %237 {strides = array<i32>} : memref<8x128xf32, #tpu.memory_space<vmem>>, vector<8x128xf32>,
    } else {
    }
    return
  }
  func.func @transform_0(%arg0: i32, %arg1: i32) -> (i32, i32, i32) {
    %c0_i32 = arith.constant 0 : i32
    %c0_i32_0 = arith.constant 0 : i32
    return %arg0, %arg1, %c0_i32 : i32, i32, i32
  }
  func.func @transform_1(%arg0: i32, %arg1: i32) -> (i32, i32) {
    %c0_i32 = arith.constant 0 : i32
    %c0_i32_0 = arith.constant 0 : i32
    %c0_i32_1 = arith.constant 0 : i32
    return %c0_i32, %c0_i32_0 : i32, i32
  }
  func.func @transform_2(%arg0: i32, %arg1: i32) -> (i32, i32) {
    %c0_i32 = arith.constant 0 : i32
    %c0_i32_0 = arith.constant 0 : i32
    %c0_i32_1 = arith.constant 0 : i32
    return %c0_i32, %c0_i32_0 : i32, i32
  }
  func.func @transform_3(%arg0: i32, %arg1: i32) -> (i32, i32) {
    %c0_i32 = arith.constant 0 : i32
    %c0_i32_0 = arith.constant 0 : i32
    %c0_i32_1 = arith.constant 0 : i32
    return %c0_i32, %c0_i32_0 : i32, i32
  }
  func.func @transform_4(%arg0: i32, %arg1: i32) -> (i32, i32) {
    %c0_i32 = arith.constant 0 : i32
    %c0_i32_0 = arith.constant 0 : i32
    %c0_i32_1 = arith.constant 0 : i32
    return %c0_i32, %c0_i32_0 : i32, i32
  }
  func.func @transform_5(%arg0: i32, %arg1: i32) -> (i32, i32) {
    %c0_i32 = arith.constant 0 : i32
    %c0_i32_0 = arith.constant 0 : i32
    %c0_i32_1 = arith.constant 0 : i32
    return %c0_i32, %c0_i32_0 : i32, i32
  }
  func.func @transform_6(%arg0: i32, %arg1: i32) -> (i32, i32) {
    %c0_i32 = arith.constant 0 : i32
    %c0_i32_0 = arith.constant 0 : i32
    return %arg0, %c0_i32 : i32, i32
  }
}

</mosaic_0001>

<llo_original>
// kernel: tpu_custom_call.1
$region0: #{tpu_custom_call.1}
  #allocation0 [shape = 'u32[]', space=smem, size = 0x4, offset = 0x4, fixed_abs, tag = 'smem constant byte address 0x4 - core index']
  #allocation1 [shape = 'u32[144,128]{1,0:T(1,128)}', space=vmem, size = 0x12000, scoped, tag = 'internal scratch']
  #allocation2 [shape = 'bf16[64,512]{1,0:T(8,128)(2,1)}', space=vmem, size = 0x10000, scoped, tag = 'scratch operand']
  #allocation3 [shape = 'f32[8,128]{1,0:T(8,128)}', space=vmem, size = 0x1000, scoped, tag = 'scratch operand']
  #allocation4 [shape = 'f32[8,128]{1,0:T(8,128)}', space=vmem, size = 0x1000, scoped, tag = 'scratch operand']
  %s0 = inlined_call_operand.hbm [shape: bf16[8,16,128], index: 0, kind: input, shape index: {}]
  %s1 = inlined_call_operand.hbm [shape: bf16[128,512], index: 1, kind: input, shape index: {}]
  %s2 = inlined_call_operand.hbm [shape: bf16[128,512], index: 2, kind: input, shape index: {}]
  %s3 = inlined_call_operand.vmem [shape: f32[1,512], index: 3, kind: input, shape index: {}]
  %s4 = inlined_call_operand.hbm [shape: bf16[128,128], index: 4, kind: input, shape index: {}]
  %s5 = inlined_call_operand.vmem [shape: f32[1,128], index: 5, kind: input, shape index: {}]
  %s6 = inlined_call_operand.hbm [shape: f32[8,128], index: 6, kind: output, shape index: {}]
  %s7 = sld [smem:[#allocation0]]
  $region81: #{tpu_custom_call.1} parent=0
    _
  %s9 = ssub.s32 1, %s7
  %s10 = scalar_select 0, %s9, %s7
  $region1: #{tpu_custom_call.1} parent=0
    #allocation5 [shape = 'u8[32768]{0}', space=vmem, size = 0x8000, scoped, tag = 'input window, operand 0']
    #allocation6 [shape = 's32[2]{0}', space=sflag, size = 0x8, scoped, tag = 'scoped memory for tpu_custom_call.1']
    #allocation7 [shape = 's32[2]{0}', space=sflag, size = 0x8, scoped, tag = 'scoped memory for tpu_custom_call.1']
    #allocation8 [shape = 'u8[131072]{0}', space=vmem, size = 0x20000, scoped, tag = 'input window, operand 1, single buffered']
    #allocation9 [shape = 's32[1]{0}', space=sflag, size = 0x4, scoped, tag = 'scoped memory for tpu_custom_call.1']
    #allocation10 [shape = 'u8[131072]{0}', space=vmem, size = 0x20000, scoped, tag = 'input window, operand 2, single buffered']
    #allocation11 [shape = 'u8[32768]{0}', space=vmem, size = 0x8000, scoped, tag = 'input window, operand 4, single buffered']
    #allocation12 [shape = 's32[1]{0}', space=sflag, size = 0x4, scoped, tag = 'scoped memory for tpu_custom_call.1']
    #allocation13 [shape = 'u8[4096]{0}', space=vmem, size = 0x1000, scoped, tag = 'output window, operand 0, single buffered']
    %11 = vsyncpa [#allocation6], 0
    %s12 = scalar_lea.sflag [#allocation6], 1
    %13 = vsyncpa %s12, 0
    %14 = vsyncpa [#allocation9], 0
    %15 = vsyncpa [#allocation12], 0
    %16 = vsyncpa [#allocation7], 0
    loop: start=0, step=1, limit=4
    $region2: #{tpu_custom_call.1} parent=1 // loop_pre_header
      _
    $region3: #{tpu_custom_call.1} parent=1 // loop_header
      %s18 = sphi 0, %s22
      %p19 = scmp.ge.s32.totalorder %s18, 4
      %s25 = sphi 0, %s37
      %s26 = sphi 0, %s33
      %s27 = sphi 0, %s25
      %s28 = sphi 0, %s26
      %s29 = sphi 0, %s27
      %s30 = sphi 0, %s28
      %s42 = sphi 0, %s44
      %s45 = sphi 0, %s42
      %s46 = sphi 0, %s45
      %s62 = sphi 0, %s46
      %s66 = sphi 0, %s66
      %s68 = sphi 0, %s66
      %s69 = sphi 0, %s68
      %s83 = sphi 0, %s69
      %s87 = sphi 0, %s87
      %s89 = sphi 0, %s87
      %s90 = sphi 0, %s89
      %s104 = sphi 0, %s90
      %s108 = sphi 0, %s108
      %s110 = sphi 0, %s108
      %s111 = sphi 0, %s110
      %s125 = sphi 0, %s111
      %s129 = sphi 0, %s129
      %s131 = sphi 0, %s129
      %s132 = sphi 0, %s131
      %s146 = sphi 0, %s132
      %s150 = sphi 0, %s150
      %s152 = sphi 0, %s150
      %s153 = sphi 0, %s152
      %s167 = sphi 0, %s153
      %s173 = sphi 0, %s175
      %s176 = sphi 0, %s173
      %s177 = sphi 0, %s176
      %s193 = sphi 0, %s177
    $region4: #{tpu_custom_call.1} parent=1 // loop_header_branch
      %21 = sbr.rel (%p19) target = $region8
    $region5: #{tpu_custom_call.1} parent=1 // loop_body
      %s23 = ssub.s32 %s18, 1
      %s24 = ssub.s32 %s18, 2
      %s31 = sadd.s32 1, %s26
      %p32 = scmp.ge.s32.totalorder %s31, 2
      %s33 = scalar_select %p32, 0, %s31
      %s34 = sadd.s32 1, %s25
      %s35 = scalar_select %p32, %s34, %s25
      %p36 = scmp.ge.s32.totalorder %s35, 1
      %s37 = scalar_select %p36, 0, %s35
      %s38 = ssub.s32 %s25, %s37
      %s39 = ssub.s32 %s26, %s33
      %s40 = sor.u32 %s38, %s39
      %p41 = scmp.eq.s32.totalorder %s40, 0
      %s43 = sadd.s32 %s42, 1
      %s44 = scalar_select %p41, %s42, %s43
      %p47 = pneg %p41
      %p48 = scmp.eq.s32.totalorder %s18, 1
      %p49 = por %p47, %p48
      %p50 = scmp.ne.s32.totalorder %s42, %s45
      %p51 = scmp.eq.s32.totalorder %s18, 0
      %p52 = por %p50, %p51
      %p53 = scmp.ne.s32.totalorder %s42, %s45
      %p54 = scmp.eq.s32.totalorder %s23, 1
      %p55 = por %p53, %p54
      %p56 = scmp.ne.s32.totalorder %s45, %s46
      %p57 = scmp.eq.s32.totalorder %s23, 0
      %p58 = por %p56, %p57
      %p59 = scmp.ne.s32.totalorder %s45, %s46
      %p60 = scmp.eq.s32.totalorder %s24, 1
      %p61 = por %p59, %p60
      %p63 = scmp.ne.s32.totalorder %s46, %s62
      %p64 = scmp.eq.s32.totalorder %s24, 0
      %p65 = por %p63, %p64
      %s67 = sadd.s32 %s66, 1
      %p70 = scmp.eq.s32.totalorder %s18, 1
      %p71 = scmp.ne.s32.totalorder %s66, %s68
      %p72 = scmp.eq.s32.totalorder %s18, 0
      %p73 = por %p71, %p72
      %p74 = scmp.ne.s32.totalorder %s66, %s68
      %p75 = scmp.eq.s32.totalorder %s23, 1
      %p76 = por %p74, %p75
      %p77 = scmp.ne.s32.totalorder %s68, %s69
      %p78 = scmp.eq.s32.totalorder %s23, 0
      %p79 = por %p77, %p78
      %p80 = scmp.ne.s32.totalorder %s68, %s69
      %p81 = scmp.eq.s32.totalorder %s24, 1
      %p82 = por %p80, %p81
      %p84 = scmp.ne.s32.totalorder %s69, %s83
      %p85 = scmp.eq.s32.totalorder %s24, 0
      %p86 = por %p84, %p85
      %s88 = sadd.s32 %s87, 1
      %p91 = scmp.eq.s32.totalorder %s18, 1
      %p92 = scmp.ne.s32.totalorder %s87, %s89
      %p93 = scmp.eq.s32.totalorder %s18, 0
      %p94 = por %p92, %p93
      %p95 = scmp.ne.s32.totalorder %s87, %s89
      %p96 = scmp.eq.s32.totalorder %s23, 1
      %p97 = por %p95, %p96
      %p98 = scmp.ne.s32.totalorder %s89, %s90
      %p99 = scmp.eq.s32.totalorder %s23, 0
      %p100 = por %p98, %p99
      %p101 = scmp.ne.s32.totalorder %s89, %s90
      %p102 = scmp.eq.s32.totalorder %s24, 1
      %p103 = por %p101, %p102
      %p105 = scmp.ne.s32.totalorder %s90, %s104
      %p106 = scmp.eq.s32.totalorder %s24, 0
      %p107 = por %p105, %p106
      %s109 = sadd.s32 %s108, 1
      %p112 = scmp.eq.s32.totalorder %s18, 1
      %p113 = scmp.ne.s32.totalorder %s108, %s110
      %p114 = scmp.eq.s32.totalorder %s18, 0
      %p115 = por %p113, %p114
      %p116 = scmp.ne.s32.totalorder %s108, %s110
      %p117 = scmp.eq.s32.totalorder %s23, 1
      %p118 = por %p116, %p117
      %p119 = scmp.ne.s32.totalorder %s110, %s111
      %p120 = scmp.eq.s32.totalorder %s23, 0
      %p121 = por %p119, %p120
      %p122 = scmp.ne.s32.totalorder %s110, %s111
      %p123 = scmp.eq.s32.totalorder %s24, 1
      %p124 = por %p122, %p123
      %p126 = scmp.ne.s32.totalorder %s111, %s125
      %p127 = scmp.eq.s32.totalorder %s24, 0
      %p128 = por %p126, %p127
      %s130 = sadd.s32 %s129, 1
      %p133 = scmp.eq.s32.totalorder %s18, 1
      %p134 = scmp.ne.s32.totalorder %s129, %s131
      %p135 = scmp.eq.s32.totalorder %s18, 0
      %p136 = por %p134, %p135
      %p137 = scmp.ne.s32.totalorder %s129, %s131
      %p138 = scmp.eq.s32.totalorder %s23, 1
      %p139 = por %p137, %p138
      %p140 = scmp.ne.s32.totalorder %s131, %s132
      %p141 = scmp.eq.s32.totalorder %s23, 0
      %p142 = por %p140, %p141
      %p143 = scmp.ne.s32.totalorder %s131, %s132
      %p144 = scmp.eq.s32.totalorder %s24, 1
      %p145 = por %p143, %p144
      %p147 = scmp.ne.s32.totalorder %s132, %s146
      %p148 = scmp.eq.s32.totalorder %s24, 0
      %p149 = por %p147, %p148
      %s151 = sadd.s32 %s150, 1
      %p154 = scmp.eq.s32.totalorder %s18, 1
      %p155 = scmp.ne.s32.totalorder %s150, %s152
      %p156 = scmp.eq.s32.totalorder %s18, 0
      %p157 = por %p155, %p156
      %p158 = scmp.ne.s32.totalorder %s150, %s152
      %p159 = scmp.eq.s32.totalorder %s23, 1
      %p160 = por %p158, %p159
      %p161 = scmp.ne.s32.totalorder %s152, %s153
      %p162 = scmp.eq.s32.totalorder %s23, 0
      %p163 = por %p161, %p162
      %p164 = scmp.ne.s32.totalorder %s152, %s153
      %p165 = scmp.eq.s32.totalorder %s24, 1
      %p166 = por %p164, %p165
      %p168 = scmp.ne.s32.totalorder %s153, %s167
      %p169 = scmp.eq.s32.totalorder %s24, 0
      %p170 = por %p168, %p169
      %s171 = ssub.s32 %s25, %s37
      %p172 = scmp.eq.s32.totalorder %s171, 0
      %s174 = sadd.s32 %s173, 1
      %s175 = scalar_select %p172, %s173, %s174
      %p178 = pneg %p172
      %p179 = scmp.eq.s32.totalorder %s18, 1
      %p180 = por %p178, %p179
      %p181 = scmp.ne.s32.totalorder %s173, %s176
      %p182 = scmp.eq.s32.totalorder %s18, 0
      %p183 = por %p181, %p182
      %p184 = scmp.ne.s32.totalorder %s173, %s176
      %p185 = scmp.eq.s32.totalorder %s23, 1
      %p186 = por %p184, %p185
      %p187 = scmp.ne.s32.totalorder %s176, %s177
      %p188 = scmp.eq.s32.totalorder %s23, 0
      %p189 = por %p187, %p188
      %p190 = scmp.ne.s32.totalorder %s176, %s177
      %p191 = scmp.eq.s32.totalorder %s24, 1
      %p192 = por %p190, %p191
      %p194 = scmp.ne.s32.totalorder %s177, %s193
      %p195 = scmp.eq.s32.totalorder %s24, 0
      %p196 = por %p194, %p195
      %p197 = scmp.le.s32.totalorder 1, %s18
      %p198 = scmp.lt.s32.totalorder %s18, 3
      %p199 = pnand %p197, %p198
      %p200 = pneg %p199
      // Predicated region
      $region9: #{tpu_custom_call.1} parent=5 // pred_check
        _
      $region10: #{tpu_custom_call.1} parent=5 // pred_check_branch
        %202 = sbr.rel (%p199) target = $region12
      $region11: #{tpu_custom_call.1} parent=5 // pred_region
        %s203 = ssub.s32 %s18, 1
        // Predicated region
        $region13: #{tpu_custom_call.1} parent=11 // pred_check
          %p204 = pneg %p79
        $region14: #{tpu_custom_call.1} parent=11 // pred_check_branch
          %206 = sbr.rel (%p204) target = $region16
        $region15: #{tpu_custom_call.1} parent=11 // pred_region
          %s208 = ssub.s32 4096, 4096
          %209 = vsyncadd [#allocation9], %s208
          %s210 = sshll.u32 [#allocation8], 4
          %s211 = int_to_ptr.vmem [resolvable:$true] %s210
          %216 = dma.hbm_to_vmem [thread:$0]  %s1, 4096, %s211, [#allocation9], 256, 256, 16
        $region16: #{tpu_custom_call.1} parent=11 // pred_fallthru
          _
        // Predicated region
        $region17: #{tpu_custom_call.1} parent=11 // pred_check
          %p217 = pneg %p100
        $region18: #{tpu_custom_call.1} parent=11 // pred_check_branch
          %219 = sbr.rel (%p217) target = $region20
        $region19: #{tpu_custom_call.1} parent=11 // pred_region
          %s221 = ssub.s32 4096, 4096
          %222 = vsyncadd [#allocation9], %s221
          %s223 = sshll.u32 [#allocation10], 4
          %s224 = int_to_ptr.vmem [resolvable:$true] %s223
          %229 = dma.hbm_to_vmem [thread:$0]  %s2, 4096, %s224, [#allocation9], 256, 256, 16
        $region20: #{tpu_custom_call.1} parent=11 // pred_fallthru
          _
        // Predicated region
        $region21: #{tpu_custom_call.1} parent=11 // pred_check
          %p230 = pneg %p121
        $region22: #{tpu_custom_call.1} parent=11 // pred_check_branch
          %232 = sbr.rel (%p230) target = $region24
        $region23: #{tpu_custom_call.1} parent=11 // pred_region
          _
        $region24: #{tpu_custom_call.1} parent=11 // pred_fallthru
          _
        // Predicated region
        $region25: #{tpu_custom_call.1} parent=11 // pred_check
          %p233 = pneg %p142
        $region26: #{tpu_custom_call.1} parent=11 // pred_check_branch
          %235 = sbr.rel (%p233) target = $region28
        $region27: #{tpu_custom_call.1} parent=11 // pred_region
          %s237 = ssub.s32 1024, 1024
          %238 = vsyncadd [#allocation12], %s237
          %s239 = sshll.u32 [#allocation11], 4
          %s240 = int_to_ptr.vmem [resolvable:$true] %s239
          %245 = dma.hbm_to_vmem [thread:$0]  %s4, 1024, %s240, [#allocation12], 64, 64, 4
        $region28: #{tpu_custom_call.1} parent=11 // pred_fallthru
          _
        // Predicated region
        $region29: #{tpu_custom_call.1} parent=11 // pred_check
          %p246 = pneg %p163
        $region30: #{tpu_custom_call.1} parent=11 // pred_check_branch
          %248 = sbr.rel (%p246) target = $region32
        $region31: #{tpu_custom_call.1} parent=11 // pred_region
          _
        $region32: #{tpu_custom_call.1} parent=11 // pred_fallthru
          _
      $region12: #{tpu_custom_call.1} parent=5 // pred_fallthru
        _
      %p249 = scmp.lt.s32.totalorder %s18, 2
      // Predicated region
      $region33: #{tpu_custom_call.1} parent=5 // pred_check
        %p250 = pneg %p249
      $region34: #{tpu_custom_call.1} parent=5 // pred_check_branch
        %252 = sbr.rel (%p250) target = $region36
      $region35: #{tpu_custom_call.1} parent=5 // pred_region
        // Predicated region
        $region37: #{tpu_custom_call.1} parent=35 // pred_check
          %p253 = pneg %p52
        $region38: #{tpu_custom_call.1} parent=35 // pred_check_branch
          %255 = sbr.rel (%p253) target = $region40
        $region39: #{tpu_custom_call.1} parent=35 // pred_region
          %s256 = sand.u32 %s42, 1
          %s257 = scalar_lea.sflag [#allocation6], %s256
          %s258 = sand.u32 %s42, 1
          %s259 = smul.addr %s258, 32
          %s260 = scalar_lea.vmem [#allocation5], %s259
          %s261 = smul.u32 8, %s25
          %s263 = ssub.s32 512, 512
          %264 = vsyncadd %s257, %s263
          %s265 = smul.addr %s261, 2
          %s266 = sadd.s32 %s26, %s265
          %s267 = smul.addr %s266, 64
          %s268 = scalar_lea.hbm %s0, %s267
          %s269 = sshll.u32 %s260, 4
          %s270 = int_to_ptr.vmem [resolvable:$true] %s269
          %275 = dma.hbm_to_vmem [thread:$0]  %s268, 512, %s270, %s257, 128, 64, 4
        $region40: #{tpu_custom_call.1} parent=35 // pred_fallthru
          _
      $region36: #{tpu_custom_call.1} parent=5 // pred_fallthru
        _
      %p276 = scmp.le.s32.totalorder 1, %s18
      %p277 = scmp.lt.s32.totalorder %s18, 3
      %p278 = pnand %p276, %p277
      %p279 = pneg %p278
      // Predicated region
      $region41: #{tpu_custom_call.1} parent=5 // pred_check
        _
      $region42: #{tpu_custom_call.1} parent=5 // pred_check_branch
        %281 = sbr.rel (%p278) target = $region44
      $region43: #{tpu_custom_call.1} parent=5 // pred_region
        %s282 = ssub.s32 %s18, 1
        %s283 = sand.u32 %s45, 1
        %s284 = scalar_lea.sflag [#allocation6], %s283
        %s285 = sand.u32 %s45, 1
        %s286 = smul.addr %s285, 32
        %s287 = scalar_lea.vmem [#allocation5], %s286
        // Predicated region
        $region45: #{tpu_custom_call.1} parent=43 // pred_check
          %p288 = pneg %p58
        $region46: #{tpu_custom_call.1} parent=43 // pred_check_branch
          %290 = sbr.rel (%p288) target = $region48
        $region47: #{tpu_custom_call.1} parent=43 // pred_region
          %291 = dma.done %s284, 512
        $region48: #{tpu_custom_call.1} parent=43 // pred_fallthru
          _
        // Predicated region
        $region49: #{tpu_custom_call.1} parent=43 // pred_check
          %p292 = pneg %p79
        $region50: #{tpu_custom_call.1} parent=43 // pred_check_branch
          %294 = sbr.rel (%p292) target = $region52
        $region51: #{tpu_custom_call.1} parent=43 // pred_region
          %295 = dma.done [#allocation9], 4096
        $region52: #{tpu_custom_call.1} parent=43 // pred_fallthru
          _
        // Predicated region
        $region53: #{tpu_custom_call.1} parent=43 // pred_check
          %p296 = pneg %p100
        $region54: #{tpu_custom_call.1} parent=43 // pred_check_branch
          %298 = sbr.rel (%p296) target = $region56
        $region55: #{tpu_custom_call.1} parent=43 // pred_region
          %299 = dma.done [#allocation9], 4096
        $region56: #{tpu_custom_call.1} parent=43 // pred_fallthru
          _
        // Predicated region
        $region57: #{tpu_custom_call.1} parent=43 // pred_check
          %p300 = pneg %p142
        $region58: #{tpu_custom_call.1} parent=43 // pred_check_branch
          %302 = sbr.rel (%p300) target = $region60
        $region59: #{tpu_custom_call.1} parent=43 // pred_region
          %303 = dma.done [#allocation12], 1024
        $region60: #{tpu_custom_call.1} parent=43 // pred_fallthru
          _
        %s304 = sand.u32 %s45, 1
        %s305 = scalar_lea.sflag [#allocation6], %s304
        %s306 = sand.u32 %s45, 1
        %s307 = smul.addr %s306, 32
        %s308 = scalar_lea.vmem [#allocation5], %s307
        %p309 = pneg %p58
        %p310 = pneg %p55
        %p311 = pneg %p79
        %p312 = pneg %p76
        %p313 = pneg %p100
        %p314 = pneg %p97
        %p315 = pneg %p121
        %p316 = pneg %p118
        %p317 = pneg %p142
        %p318 = pneg %p139
        %p319 = pneg %p163
        %p320 = pneg %p160
        %p321 = pneg %p189
        %p322 = pneg %p186
        %s323 = smul.u32 8, %s27
        %p325 = scmp.eq.s32.totalorder %s28, 0
        // Predicated region
        $region61: #{tpu_custom_call.1} parent=43 // pred_check
          %p326 = pneg %p325
        $region62: #{tpu_custom_call.1} parent=43 // pred_check_branch
          %328 = sbr.rel (%p326) target = $region64
        $region63: #{tpu_custom_call.1} parent=43 // pred_region
          %329 = vst [vmem:[#allocation3] sm:$0xff] 0.0
          %330 = vst [vmem:[#allocation4] sm:$0xff] 0.0
        $region64: #{tpu_custom_call.1} parent=43 // pred_fallthru
          _
        %v331 = vld [vmem:[%s287] sm:$0xf]
        %v332 = vld [vmem:[%s287 + $0x4] sm:$0xf]
        %v333 = vld [vmem:[%s287 + $0x8] sm:$0xf]
        %v334 = vld [vmem:[%s287 + $0xc] sm:$0xf]
        %v335 = vld [vmem:[%s287 + $0x10] sm:$0xf]
        %v336 = vld [vmem:[%s287 + $0x14] sm:$0xf]
        %v337 = vld [vmem:[%s287 + $0x18] sm:$0xf]
        %v338 = vld [vmem:[%s287 + $0x1c] sm:$0xf]
        %v339 = vcombine.low %v331, %v335
        %v341 = vunpack.c.l.s4 1983009808
        %v342 = vunpack.c.0.s8 %v341
        %v343 = vlaneseq
        %v344 = vshrl.u32 %v343, 7
        %v345 = vsub.s32 %v342, %v344
        %v346 = vrot.slane %v339, %v345
        %v347 = vcombine.low %v333, %v337
        %v349 = vunpack.c.l.s4 1983009808
        %v350 = vunpack.c.0.s8 %v349
        %v351 = vlaneseq
        %v352 = vshrl.u32 %v351, 7
        %v353 = vsub.s32 %v350, %v352
        %v354 = vrot.slane %v347, %v353
        %v355 = vcombine.low %v346, %v354
        %v356 = vcombine.high %v346, %v354
        %v358 = vunpack.c.l.s4 1934713408
        %v359 = vunpack.c.0.s8 %v358
        %v360 = vlaneseq
        %v361 = vshrl.u32 %v360, 7
        %v362 = vsub.s32 %v359, %v361
        %v363 = vrot.slane %v355, %v362
        %v365 = vunpack.c.l.s4 1934713408
        %v366 = vunpack.c.0.s8 %v365
        %v367 = vlaneseq
        %v368 = vshrl.u32 %v367, 7
        %v369 = vsub.s32 %v366, %v368
        %v370 = vrot.slane %v356, %v369
        %v371 = vcombine.high %v363, 0
        %v372 = vcombine.high %v370, 0
        %v373 = vcombine.low %v332, %v336
        %v375 = vunpack.c.l.s4 1983009808
        %v376 = vunpack.c.0.s8 %v375
        %v377 = vlaneseq
        %v378 = vshrl.u32 %v377, 7
        %v379 = vsub.s32 %v376, %v378
        %v380 = vrot.slane %v373, %v379
        %v381 = vcombine.low %v334, %v338
        %v383 = vunpack.c.l.s4 1983009808
        %v384 = vunpack.c.0.s8 %v383
        %v385 = vlaneseq
        %v386 = vshrl.u32 %v385, 7
        %v387 = vsub.s32 %v384, %v386
        %v388 = vrot.slane %v381, %v387
        %v389 = vcombine.low %v380, %v388
        %v390 = vcombine.high %v380, %v388
        %v392 = vunpack.c.l.s4 1934713408
        %v393 = vunpack.c.0.s8 %v392
        %v394 = vlaneseq
        %v395 = vshrl.u32 %v394, 7
        %v396 = vsub.s32 %v393, %v395
        %v397 = vrot.slane %v389, %v396
        %v399 = vunpack.c.l.s4 1934713408
        %v400 = vunpack.c.0.s8 %v399
        %v401 = vlaneseq
        %v402 = vshrl.u32 %v401, 7
        %v403 = vsub.s32 %v400, %v402
        %v404 = vrot.slane %v390, %v403
        %v405 = vcombine.high %v397, 0
        %v406 = vcombine.high %v404, 0
        %v409 = vpack.i.b16 %v397, %v363
        %v410 = vshrl.u32 %v363, 16
        %v411 = vshrl.u32 %v397, 16
        %v412 = vpack.i.b16 %v411, %v410
        %v415 = vpack.i.b16 %v405, %v371
        %v416 = vshrl.u32 %v371, 16
        %v417 = vshrl.u32 %v405, 16
        %v418 = vpack.i.b16 %v417, %v416
        %v421 = vpack.i.b16 %v404, %v370
        %v422 = vshrl.u32 %v370, 16
        %v423 = vshrl.u32 %v404, 16
        %v424 = vpack.i.b16 %v423, %v422
        %v427 = vpack.i.b16 %v406, %v372
        %v428 = vshrl.u32 %v372, 16
        %v429 = vshrl.u32 %v406, 16
        %v430 = vpack.i.b16 %v429, %v428
        %v431 = vld [vmem:[#allocation8] sm:$0xff]
        %v432 = vld [vmem:[#allocation8 + $0x8] sm:$0xff]
        %v433 = vld [vmem:[#allocation8 + $0x10] sm:$0xff]
        %v434 = vld [vmem:[#allocation8 + $0x18] sm:$0xff]
        %v435 = vld [vmem:[#allocation8 + $0x20] sm:$0xff]
        %v436 = vld [vmem:[#allocation8 + $0x28] sm:$0xff]
        %v437 = vld [vmem:[#allocation8 + $0x30] sm:$0xff]
        %v438 = vld [vmem:[#allocation8 + $0x38] sm:$0xff]
        %v439 = vld [vmem:[#allocation8 + $0x40] sm:$0xff]
        %v440 = vld [vmem:[#allocation8 + $0x48] sm:$0xff]
        %v441 = vld [vmem:[#allocation8 + $0x50] sm:$0xff]
        %v442 = vld [vmem:[#allocation8 + $0x58] sm:$0xff]
        %v443 = vld [vmem:[#allocation8 + $0x60] sm:$0xff]
        %v444 = vld [vmem:[#allocation8 + $0x68] sm:$0xff]
        %v445 = vld [vmem:[#allocation8 + $0x70] sm:$0xff]
        %v446 = vld [vmem:[#allocation8 + $0x78] sm:$0xff]
        %v447 = vld [vmem:[#allocation8 + $0x80] sm:$0xff]
        %v448 = vld [vmem:[#allocation8 + $0x88] sm:$0xff]
        %v449 = vld [vmem:[#allocation8 + $0x90] sm:$0xff]
        %v450 = vld [vmem:[#allocation8 + $0x98] sm:$0xff]
        %v451 = vld [vmem:[#allocation8 + $0xa0] sm:$0xff]
        %v452 = vld [vmem:[#allocation8 + $0xa8] sm:$0xff]
        %v453 = vld [vmem:[#allocation8 + $0xb0] sm:$0xff]
        %v454 = vld [vmem:[#allocation8 + $0xb8] sm:$0xff]
        %v455 = vld [vmem:[#allocation8 + $0xc0] sm:$0xff]
        %v456 = vld [vmem:[#allocation8 + $0xc8] sm:$0xff]
        %v457 = vld [vmem:[#allocation8 + $0xd0] sm:$0xff]
        %v458 = vld [vmem:[#allocation8 + $0xd8] sm:$0xff]
        %v459 = vld [vmem:[#allocation8 + $0xe0] sm:$0xff]
        %v460 = vld [vmem:[#allocation8 + $0xe8] sm:$0xff]
        %v461 = vld [vmem:[#allocation8 + $0xf0] sm:$0xff]
        %v462 = vld [vmem:[#allocation8 + $0xf8] sm:$0xff]
        %v463 = vunpack.c.l.b16 %v409
        %v464 = vunpack.c.l.b16 %v412
        %v465 = vunpack.c.l.b16 %v415
        %v466 = vunpack.c.l.b16 %v418
        %v467 = vunpack.c.l.b16 %v421
        %v468 = vunpack.c.l.b16 %v424
        %v469 = vunpack.c.l.b16 %v427
        %v470 = vunpack.c.l.b16 %v430
        %v471 = vpack.c.b16 %v464, %v463
        %v472 = vpack.c.b16 %v466, %v465
        %v473 = vpack.c.b16 %v468, %v467
        %v474 = vpack.c.b16 %v470, %v469
        %v511 = vunpack.c.l.b16 %v431
        %v512 = vunpack.c.h.b16 %v431
        %v513 = vunpack.c.l.b16 %v432
        %v514 = vunpack.c.h.b16 %v432
        %v515 = vunpack.c.l.b16 %v433
        %v516 = vunpack.c.h.b16 %v433
        %v517 = vunpack.c.l.b16 %v434
        %v518 = vunpack.c.h.b16 %v434
        %v519 = vunpack.c.l.b16 %v435
        %v520 = vunpack.c.h.b16 %v435
        %v521 = vunpack.c.l.b16 %v436
        %v522 = vunpack.c.h.b16 %v436
        %v523 = vunpack.c.l.b16 %v437
        %v524 = vunpack.c.h.b16 %v437
        %v525 = vunpack.c.l.b16 %v438
        %v526 = vunpack.c.h.b16 %v438
        %v527 = vunpack.c.l.b16 %v439
        %v528 = vunpack.c.h.b16 %v439
        %v529 = vunpack.c.l.b16 %v440
        %v530 = vunpack.c.h.b16 %v440
        %v531 = vunpack.c.l.b16 %v441
        %v532 = vunpack.c.h.b16 %v441
        %v533 = vunpack.c.l.b16 %v442
        %v534 = vunpack.c.h.b16 %v442
        %v535 = vunpack.c.l.b16 %v443
        %v536 = vunpack.c.h.b16 %v443
        %v537 = vunpack.c.l.b16 %v444
        %v538 = vunpack.c.h.b16 %v444
        %v539 = vunpack.c.l.b16 %v445
        %v540 = vunpack.c.h.b16 %v445
        %v541 = vunpack.c.l.b16 %v446
        %v542 = vunpack.c.h.b16 %v446
        %v543 = vunpack.c.l.b16 %v447
        %v544 = vunpack.c.h.b16 %v447
        %v545 = vunpack.c.l.b16 %v448
        %v546 = vunpack.c.h.b16 %v448
        %v547 = vunpack.c.l.b16 %v449
        %v548 = vunpack.c.h.b16 %v449
        %v549 = vunpack.c.l.b16 %v450
        %v550 = vunpack.c.h.b16 %v450
        %v551 = vunpack.c.l.b16 %v451
        %v552 = vunpack.c.h.b16 %v451
        %v553 = vunpack.c.l.b16 %v452
        %v554 = vunpack.c.h.b16 %v452
        %v555 = vunpack.c.l.b16 %v453
        %v556 = vunpack.c.h.b16 %v453
        %v557 = vunpack.c.l.b16 %v454
        %v558 = vunpack.c.h.b16 %v454
        %v559 = vunpack.c.l.b16 %v455
        %v560 = vunpack.c.h.b16 %v455
        %v561 = vunpack.c.l.b16 %v456
        %v562 = vunpack.c.h.b16 %v456
        %v563 = vunpack.c.l.b16 %v457
        %v564 = vunpack.c.h.b16 %v457
        %v565 = vunpack.c.l.b16 %v458
        %v566 = vunpack.c.h.b16 %v458
        %v567 = vunpack.c.l.b16 %v459
        %v568 = vunpack.c.h.b16 %v459
        %v569 = vunpack.c.l.b16 %v460
        %v570 = vunpack.c.h.b16 %v460
        %v571 = vunpack.c.l.b16 %v461
        %v572 = vunpack.c.h.b16 %v461
        %v573 = vunpack.c.l.b16 %v462
        %v574 = vunpack.c.h.b16 %v462
        %v575 = vpack.c.b16 %v515, %v511
        %v576 = vpack.c.b16 %v516, %v512
        %v577 = vpack.c.b16 %v517, %v513
        %v578 = vpack.c.b16 %v518, %v514
        %v579 = vpack.c.b16 %v523, %v519
        %v580 = vpack.c.b16 %v524, %v520
        %v581 = vpack.c.b16 %v525, %v521
        %v582 = vpack.c.b16 %v526, %v522
        %v583 = vpack.c.b16 %v531, %v527
        %v584 = vpack.c.b16 %v532, %v528
        %v585 = vpack.c.b16 %v533, %v529
        %v586 = vpack.c.b16 %v534, %v530
        %v587 = vpack.c.b16 %v539, %v535
        %v588 = vpack.c.b16 %v540, %v536
        %v589 = vpack.c.b16 %v541, %v537
        %v590 = vpack.c.b16 %v542, %v538
        %v591 = vpack.c.b16 %v547, %v543
        %v592 = vpack.c.b16 %v548, %v544
        %v593 = vpack.c.b16 %v549, %v545
        %v594 = vpack.c.b16 %v550, %v546
        %v595 = vpack.c.b16 %v555, %v551
        %v596 = vpack.c.b16 %v556, %v552
        %v597 = vpack.c.b16 %v557, %v553
        %v598 = vpack.c.b16 %v558, %v554
        %v599 = vpack.c.b16 %v563, %v559
        %v600 = vpack.c.b16 %v564, %v560
        %v601 = vpack.c.b16 %v565, %v561
        %v602 = vpack.c.b16 %v566, %v562
        %v603 = vpack.c.b16 %v571, %v567
        %v604 = vpack.c.b16 %v572, %v568
        %v605 = vpack.c.b16 %v573, %v569
        %v606 = vpack.c.b16 %v574, %v570
        %639 = vmatprep.subr.bf16.mxu0 %v604
        %640 = vmatpush1.bf16.msra.mxu0 %v603
        %641 = vmatprep.subr.bf16.mxu0 %v600
        %642 = vmatpush1.bf16.msra.mxu0 %v599
        %643 = vmatprep.subr.bf16.mxu0 %v596
        %644 = vmatpush1.bf16.msra.mxu0 %v595
        %645 = vmatprep.subr.bf16.mxu0 %v592
        %646 = vmatpush1.bf16.msra.mxu0 %v591
        %647 = vmatprep.subr.bf16.mxu0 %v588
        %648 = vmatpush1.bf16.msra.mxu0 %v587
        %649 = vmatprep.subr.bf16.mxu0 %v584
        %650 = vmatpush1.bf16.msra.mxu0 %v583
        %651 = vmatprep.subr.bf16.mxu0 %v580
        %652 = vmatpush1.bf16.msra.mxu0 %v579
        %653 = vmatprep.subr.bf16.mxu0 %v576
        %654 = vmatpush1.bf16.msra.mxu0 %v575
        %655 = vmatprep.subr.bf16.mxu0 0
        %656 = vmatpush2.bf16.msra.mxu0 0
        %657 = vmatprep.subr.bf16.mxu0 0
        %658 = vmatpush2.bf16.msra.mxu0 0
        %659 = vmatprep.subr.bf16.mxu0 0
        %660 = vmatpush2.bf16.msra.mxu0 0
        %661 = vmatprep.subr.bf16.mxu0 0
        %662 = vmatpush2.bf16.msra.mxu0 0
        %663 = vmatprep.subr.bf16.mxu0 0
        %664 = vmatpush2.bf16.msra.mxu0 0
        %665 = vmatprep.subr.bf16.mxu0 0
        %666 = vmatpush2.bf16.msra.mxu0 0
        %667 = vmatprep.subr.bf16.mxu0 0
        %668 = vmatpush2.bf16.msra.mxu0 0
        %669 = vmatprep.subr.bf16.mxu0 0
        %670 = vmatpush2.bf16.msra.mxu0 0
        %671 = vmatprep.mubr.bf16.mxu0 0
        %672 = vmatmul.mubr.bf16.gmra.mxu0 %v471
        %v673 = vpop.f32.mrf.mxu0
        %v674 = vadd.f32 0.0, %v673
        %v675 = vpop.f32.mrf.mxu0
        %v676 = vadd.f32 0.0, %v675
        %v677 = vpop.f32.mrf.mxu0
        %v678 = vadd.f32 0.0, %v677
        %v679 = vpop.f32.mrf.mxu0
        %v680 = vadd.f32 0.0, %v679
        %681 = vmatprep.mubr.bf16.mxu0 0
        %682 = vmatmul.mubr.bf16.gmra.mxu0 %v472
        %v683 = vpop.f32.mrf.mxu0
        %v684 = vadd.f32 0.0, %v683
        %v685 = vpop.f32.mrf.mxu0
        %v686 = vadd.f32 0.0, %v685
        %v687 = vpop.f32.mrf.mxu0
        %v688 = vadd.f32 0.0, %v687
        %v689 = vpop.f32.mrf.mxu0
        %v690 = vadd.f32 0.0, %v689
        %691 = vmatprep.mubr.bf16.mxu0 0
        %692 = vmatmul.mubr.bf16.gmra.mxu0 %v473
        %v693 = vpop.f32.mrf.mxu0
        %v694 = vadd.f32 0.0, %v693
        %v695 = vpop.f32.mrf.mxu0
        %v696 = vadd.f32 0.0, %v695
        %v697 = vpop.f32.mrf.mxu0
        %v698 = vadd.f32 0.0, %v697
        %v699 = vpop.f32.mrf.mxu0
        %v700 = vadd.f32 0.0, %v699
        %701 = vmatprep.mubr.bf16.mxu0 0
        %702 = vmatmul.mubr.bf16.gmra.mxu0 %v474
        %v703 = vpop.f32.mrf.mxu0
        %v704 = vadd.f32 0.0, %v703
        %v705 = vpop.f32.mrf.mxu0
        %v706 = vadd.f32 0.0, %v705
        %v707 = vpop.f32.mrf.mxu0
        %v708 = vadd.f32 0.0, %v707
        %v709 = vpop.f32.mrf.mxu0
        %v710 = vadd.f32 0.0, %v709
        %711 = vdwg.mxu0
        %712 = vmatprep.subr.bf16.mxu0 %v606
        %713 = vmatpush1.bf16.msra.mxu0 %v605
        %714 = vmatprep.subr.bf16.mxu0 %v602
        %715 = vmatpush1.bf16.msra.mxu0 %v601
        %716 = vmatprep.subr.bf16.mxu0 %v598
        %717 = vmatpush1.bf16.msra.mxu0 %v597
        %718 = vmatprep.subr.bf16.mxu0 %v594
        %719 = vmatpush1.bf16.msra.mxu0 %v593
        %720 = vmatprep.subr.bf16.mxu0 %v590
        %721 = vmatpush1.bf16.msra.mxu0 %v589
        %722 = vmatprep.subr.bf16.mxu0 %v586
        %723 = vmatpush1.bf16.msra.mxu0 %v585
        %724 = vmatprep.subr.bf16.mxu0 %v582
        %725 = vmatpush1.bf16.msra.mxu0 %v581
        %726 = vmatprep.subr.bf16.mxu0 %v578
        %727 = vmatpush1.bf16.msra.mxu0 %v577
        %728 = vmatprep.subr.bf16.mxu0 0
        %729 = vmatpush2.bf16.msra.mxu0 0
        %730 = vmatprep.subr.bf16.mxu0 0
        %731 = vmatpush2.bf16.msra.mxu0 0
        %732 = vmatprep.subr.bf16.mxu0 0
        %733 = vmatpush2.bf16.msra.mxu0 0
        %734 = vmatprep.subr.bf16.mxu0 0
        %735 = vmatpush2.bf16.msra.mxu0 0
        %736 = vmatprep.subr.bf16.mxu0 0
        %737 = vmatpush2.bf16.msra.mxu0 0
        %738 = vmatprep.subr.bf16.mxu0 0
        %739 = vmatpush2.bf16.msra.mxu0 0
        %740 = vmatprep.subr.bf16.mxu0 0
        %741 = vmatpush2.bf16.msra.mxu0 0
        %742 = vmatprep.subr.bf16.mxu0 0
        %743 = vmatpush2.bf16.msra.mxu0 0
        %744 = vmatprep.mubr.bf16.mxu0 0
        %745 = vmatmul.mubr.bf16.gmra.mxu0 %v471
        %v746 = vpop.f32.mrf.mxu0
        %v747 = vadd.f32 0.0, %v746
        %v748 = vpop.f32.mrf.mxu0
        %v749 = vadd.f32 0.0, %v748
        %v750 = vpop.f32.mrf.mxu0
        %v751 = vadd.f32 0.0, %v750
        %v752 = vpop.f32.mrf.mxu0
        %v753 = vadd.f32 0.0, %v752
        %754 = vmatprep.mubr.bf16.mxu0 0
        %755 = vmatmul.mubr.bf16.gmra.mxu0 %v472
        %v756 = vpop.f32.mrf.mxu0
        %v757 = vadd.f32 0.0, %v756
        %v758 = vpop.f32.mrf.mxu0
        %v759 = vadd.f32 0.0, %v758
        %v760 = vpop.f32.mrf.mxu0
        %v761 = vadd.f32 0.0, %v760
        %v762 = vpop.f32.mrf.mxu0
        %v763 = vadd.f32 0.0, %v762
        %764 = vmatprep.mubr.bf16.mxu0 0
        %765 = vmatmul.mubr.bf16.gmra.mxu0 %v473
        %v766 = vpop.f32.mrf.mxu0
        %v767 = vadd.f32 0.0, %v766
        %v768 = vpop.f32.mrf.mxu0
        %v769 = vadd.f32 0.0, %v768
        %v770 = vpop.f32.mrf.mxu0
        %v771 = vadd.f32 0.0, %v770
        %v772 = vpop.f32.mrf.mxu0
        %v773 = vadd.f32 0.0, %v772
        %774 = vmatprep.mubr.bf16.mxu0 0
        %775 = vmatmul.mubr.bf16.gmra.mxu0 %v474
        %v776 = vpop.f32.mrf.mxu0
        %v777 = vadd.f32 0.0, %v776
        %v778 = vpop.f32.mrf.mxu0
        %v779 = vadd.f32 0.0, %v778
        %v780 = vpop.f32.mrf.mxu0
        %v781 = vadd.f32 0.0, %v780
        %v782 = vpop.f32.mrf.mxu0
        %v783 = vadd.f32 0.0, %v782
        %784 = vdwg.mxu0
        %v785 = vpack.c.bf16 %v678, %v674
        %v786 = vpack.c.bf16 %v680, %v676
        %v787 = vpack.c.bf16 %v751, %v747
        %v788 = vpack.c.bf16 %v753, %v749
        %v789 = vpack.c.bf16 %v688, %v684
        %v790 = vpack.c.bf16 %v690, %v686
        %v791 = vpack.c.bf16 %v761, %v757
        %v792 = vpack.c.bf16 %v763, %v759
        %v793 = vpack.c.bf16 %v698, %v694
        %v794 = vpack.c.bf16 %v700, %v696
        %v795 = vpack.c.bf16 %v771, %v767
        %v796 = vpack.c.bf16 %v773, %v769
        %v797 = vpack.c.bf16 %v708, %v704
        %v798 = vpack.c.bf16 %v710, %v706
        %v799 = vpack.c.bf16 %v781, %v777
        %v800 = vpack.c.bf16 %v783, %v779
        %v817 = vunpack.c.l.b16 %v785
        %v818 = vunpack.c.l.b16 %v786
        %v819 = vunpack.c.l.b16 %v787
        %v820 = vunpack.c.l.b16 %v788
        %v821 = vunpack.c.h.b16 %v785
        %v822 = vunpack.c.h.b16 %v786
        %v823 = vunpack.c.h.b16 %v787
        %v824 = vunpack.c.h.b16 %v788
        %v825 = vunpack.c.l.b16 %v789
        %v826 = vunpack.c.l.b16 %v790
        %v827 = vunpack.c.l.b16 %v791
        %v828 = vunpack.c.l.b16 %v792
        %v829 = vunpack.c.h.b16 %v789
        %v830 = vunpack.c.h.b16 %v790
        %v831 = vunpack.c.h.b16 %v791
        %v832 = vunpack.c.h.b16 %v792
        %v833 = vunpack.c.l.b16 %v793
        %v834 = vunpack.c.l.b16 %v794
        %v835 = vunpack.c.l.b16 %v795
        %v836 = vunpack.c.l.b16 %v796
        %v837 = vunpack.c.h.b16 %v793
        %v838 = vunpack.c.h.b16 %v794
        %v839 = vunpack.c.h.b16 %v795
        %v840 = vunpack.c.h.b16 %v796
        %v841 = vunpack.c.l.b16 %v797
        %v842 = vunpack.c.l.b16 %v798
        %v843 = vunpack.c.l.b16 %v799
        %v844 = vunpack.c.l.b16 %v800
        %v845 = vunpack.c.h.b16 %v797
        %v846 = vunpack.c.h.b16 %v798
        %v847 = vunpack.c.h.b16 %v799
        %v848 = vunpack.c.h.b16 %v800
        %v849 = vpack.c.b16 %v818, %v817
        %v850 = vpack.c.b16 %v820, %v819
        %v851 = vpack.c.b16 %v822, %v821
        %v852 = vpack.c.b16 %v824, %v823
        %v853 = vpack.c.b16 %v826, %v825
        %v854 = vpack.c.b16 %v828, %v827
        %v855 = vpack.c.b16 %v830, %v829
        %v856 = vpack.c.b16 %v832, %v831
        %v857 = vpack.c.b16 %v834, %v833
        %v858 = vpack.c.b16 %v836, %v835
        %v859 = vpack.c.b16 %v838, %v837
        %v860 = vpack.c.b16 %v840, %v839
        %v861 = vpack.c.b16 %v842, %v841
        %v862 = vpack.c.b16 %v844, %v843
        %v863 = vpack.c.b16 %v846, %v845
        %v864 = vpack.c.b16 %v848, %v847
        %881 = vst [vmem:[#allocation2] sm:$0xff] %v849
        %882 = vst [vmem:[#allocation2 + $0x8] sm:$0xff] %v850
        %883 = vst [vmem:[#allocation2 + $0x10] sm:$0xff] %v851
        %884 = vst [vmem:[#allocation2 + $0x18] sm:$0xff] %v852
        %885 = vst [vmem:[#allocation2 + $0x20] sm:$0xff] %v853
        %886 = vst [vmem:[#allocation2 + $0x28] sm:$0xff] %v854
        %887 = vst [vmem:[#allocation2 + $0x30] sm:$0xff] %v855
        %888 = vst [vmem:[#allocation2 + $0x38] sm:$0xff] %v856
        %889 = vst [vmem:[#allocation2 + $0x40] sm:$0xff] %v857
        %890 = vst [vmem:[#allocation2 + $0x48] sm:$0xff] %v858
        %891 = vst [vmem:[#allocation2 + $0x50] sm:$0xff] %v859
        %892 = vst [vmem:[#allocation2 + $0x58] sm:$0xff] %v860
        %893 = vst [vmem:[#allocation2 + $0x60] sm:$0xff] %v861
        %894 = vst [vmem:[#allocation2 + $0x68] sm:$0xff] %v862
        %895 = vst [vmem:[#allocation2 + $0x70] sm:$0xff] %v863
        %896 = vst [vmem:[#allocation2 + $0x78] sm:$0xff] %v864
        %v897 = vld [vmem:[#allocation10] sm:$0xff]
        %v898 = vld [vmem:[#allocation10 + $0x8] sm:$0xff]
        %v899 = vld [vmem:[#allocation10 + $0x10] sm:$0xff]
        %v900 = vld [vmem:[#allocation10 + $0x18] sm:$0xff]
        %v901 = vld [vmem:[#allocation10 + $0x20] sm:$0xff]
        %v902 = vld [vmem:[#allocation10 + $0x28] sm:$0xff]
        %v903 = vld [vmem:[#allocation10 + $0x30] sm:$0xff]
        %v904 = vld [vmem:[#allocation10 + $0x38] sm:$0xff]
        %v905 = vld [vmem:[#allocation10 + $0x40] sm:$0xff]
        %v906 = vld [vmem:[#allocation10 + $0x48] sm:$0xff]
        %v907 = vld [vmem:[#allocation10 + $0x50] sm:$0xff]
        %v908 = vld [vmem:[#allocation10 + $0x58] sm:$0xff]
        %v909 = vld [vmem:[#allocation10 + $0x60] sm:$0xff]
        %v910 = vld [vmem:[#allocation10 + $0x68] sm:$0xff]
        %v911 = vld [vmem:[#allocation10 + $0x70] sm:$0xff]
        %v912 = vld [vmem:[#allocation10 + $0x78] sm:$0xff]
        %v913 = vld [vmem:[#allocation10 + $0x80] sm:$0xff]
        %v914 = vld [vmem:[#allocation10 + $0x88] sm:$0xff]
        %v915 = vld [vmem:[#allocation10 + $0x90] sm:$0xff]
        %v916 = vld [vmem:[#allocation10 + $0x98] sm:$0xff]
        %v917 = vld [vmem:[#allocation10 + $0xa0] sm:$0xff]
        %v918 = vld [vmem:[#allocation10 + $0xa8] sm:$0xff]
        %v919 = vld [vmem:[#allocation10 + $0xb0] sm:$0xff]
        %v920 = vld [vmem:[#allocation10 + $0xb8] sm:$0xff]
        %v921 = vld [vmem:[#allocation10 + $0xc0] sm:$0xff]
        %v922 = vld [vmem:[#allocation10 + $0xc8] sm:$0xff]
        %v923 = vld [vmem:[#allocation10 + $0xd0] sm:$0xff]
        %v924 = vld [vmem:[#allocation10 + $0xd8] sm:$0xff]
        %v925 = vld [vmem:[#allocation10 + $0xe0] sm:$0xff]
        %v926 = vld [vmem:[#allocation10 + $0xe8] sm:$0xff]
        %v927 = vld [vmem:[#allocation10 + $0xf0] sm:$0xff]
        %v928 = vld [vmem:[#allocation10 + $0xf8] sm:$0xff]
        %v929 = vld [vmem:[%s3] sm:$0xf]
        %v930 = vld [vmem:[#allocation3] sm:$0xff]
        %v931 = vld [vmem:[#allocation4] sm:$0xff]
        %s932 = smul.u32 0, 4
        %s933 = smul.addr %s932, 4
        %s934 = scalar_lea.vmem [#allocation2], %s933
        %v935 = vld [vmem:[%s934] sm:$0xff]
        %v936 = vld [vmem:[%s934 + $0x8] sm:$0xff]
        %v937 = vunpack.c.l.bf16 %v935
        %v938 = vunpack.c.h.bf16 %v935
        %v939 = vunpack.c.l.bf16 %v936
        %v940 = vunpack.c.h.bf16 %v936
        %v942 = vlaneseq
        %v943 = vshrl.u32 %v942, 7
        %v944 = vsub.s32 0, %v943
        %v945 = vrot.slane %v929, %v944
        %v946 = vlaneseq
        %v947 = vshrl.u32 %v946, 7
        %v948 = vsub.s32 1, %v947
        %v949 = vrot.slane %v929, %v948
        %v950 = vlaneseq
        %v951 = vshrl.u32 %v950, 7
        %v952 = vsub.s32 2, %v951
        %v953 = vrot.slane %v929, %v952
        %v954 = vlaneseq
        %v955 = vshrl.u32 %v954, 7
        %v956 = vsub.s32 3, %v955
        %v957 = vrot.slane %v929, %v956
        %v962 = vadd.f32 %v937, %v945
        %v963 = vadd.f32 %v938, %v949
        %v964 = vadd.f32 %v939, %v953
        %v965 = vadd.f32 %v940, %v957
        %v966 = vpack.c.bf16 %v930, %v930
        %v999 = vunpack.c.l.b16 %v897
        %v1000 = vunpack.c.h.b16 %v897
        %v1001 = vunpack.c.l.b16 %v898
        %v1002 = vunpack.c.h.b16 %v898
        %v1003 = vunpack.c.l.b16 %v899
        %v1004 = vunpack.c.h.b16 %v899
        %v1005 = vunpack.c.l.b16 %v900
        %v1006 = vunpack.c.h.b16 %v900
        %v1007 = vunpack.c.l.b16 %v901
        %v1008 = vunpack.c.h.b16 %v901
        %v1009 = vunpack.c.l.b16 %v902
        %v1010 = vunpack.c.h.b16 %v902
        %v1011 = vunpack.c.l.b16 %v903
        %v1012 = vunpack.c.h.b16 %v903
        %v1013 = vunpack.c.l.b16 %v904
        %v1014 = vunpack.c.h.b16 %v904
        %v1015 = vunpack.c.l.b16 %v905
        %v1016 = vunpack.c.h.b16 %v905
        %v1017 = vunpack.c.l.b16 %v906
        %v1018 = vunpack.c.h.b16 %v906
        %v1019 = vunpack.c.l.b16 %v907
        %v1020 = vunpack.c.h.b16 %v907
        %v1021 = vunpack.c.l.b16 %v908
        %v1022 = vunpack.c.h.b16 %v908
        %v1023 = vunpack.c.l.b16 %v909
        %v1024 = vunpack.c.h.b16 %v909
        %v1025 = vunpack.c.l.b16 %v910
        %v1026 = vunpack.c.h.b16 %v910
        %v1027 = vunpack.c.l.b16 %v911
        %v1028 = vunpack.c.h.b16 %v911
        %v1029 = vunpack.c.l.b16 %v912
        %v1030 = vunpack.c.h.b16 %v912
        %v1031 = vunpack.c.l.b16 %v913
        %v1032 = vunpack.c.h.b16 %v913
        %v1033 = vunpack.c.l.b16 %v914
        %v1034 = vunpack.c.h.b16 %v914
        %v1035 = vunpack.c.l.b16 %v915
        %v1036 = vunpack.c.h.b16 %v915
        %v1037 = vunpack.c.l.b16 %v916
        %v1038 = vunpack.c.h.b16 %v916
        %v1039 = vunpack.c.l.b16 %v917
        %v1040 = vunpack.c.h.b16 %v917
        %v1041 = vunpack.c.l.b16 %v918
        %v1042 = vunpack.c.h.b16 %v918
        %v1043 = vunpack.c.l.b16 %v919
        %v1044 = vunpack.c.h.b16 %v919
        %v1045 = vunpack.c.l.b16 %v920
        %v1046 = vunpack.c.h.b16 %v920
        %v1047 = vunpack.c.l.b16 %v921
        %v1048 = vunpack.c.h.b16 %v921
        %v1049 = vunpack.c.l.b16 %v922
        %v1050 = vunpack.c.h.b16 %v922
        %v1051 = vunpack.c.l.b16 %v923
        %v1052 = vunpack.c.h.b16 %v923
        %v1053 = vunpack.c.l.b16 %v924
        %v1054 = vunpack.c.h.b16 %v924
        %v1055 = vunpack.c.l.b16 %v925
        %v1056 = vunpack.c.h.b16 %v925
        %v1057 = vunpack.c.l.b16 %v926
        %v1058 = vunpack.c.h.b16 %v926
        %v1059 = vunpack.c.l.b16 %v927
        %v1060 = vunpack.c.h.b16 %v927
        %v1061 = vunpack.c.l.b16 %v928
        %v1062 = vunpack.c.h.b16 %v928
        %v1063 = vpack.c.b16 %v1003, %v999
        %v1064 = vpack.c.b16 %v1004, %v1000
        %v1065 = vpack.c.b16 %v1005, %v1001
        %v1066 = vpack.c.b16 %v1006, %v1002
        %v1067 = vpack.c.b16 %v1011, %v1007
        %v1068 = vpack.c.b16 %v1012, %v1008
        %v1069 = vpack.c.b16 %v1013, %v1009
        %v1070 = vpack.c.b16 %v1014, %v1010
        %v1071 = vpack.c.b16 %v1019, %v1015
        %v1072 = vpack.c.b16 %v1020, %v1016
        %v1073 = vpack.c.b16 %v1021, %v1017
        %v1074 = vpack.c.b16 %v1022, %v1018
        %v1075 = vpack.c.b16 %v1027, %v1023
        %v1076 = vpack.c.b16 %v1028, %v1024
        %v1077 = vpack.c.b16 %v1029, %v1025
        %v1078 = vpack.c.b16 %v1030, %v1026
        %v1079 = vpack.c.b16 %v1035, %v1031
        %v1080 = vpack.c.b16 %v1036, %v1032
        %v1081 = vpack.c.b16 %v1037, %v1033
        %v1082 = vpack.c.b16 %v1038, %v1034
        %v1083 = vpack.c.b16 %v1043, %v1039
        %v1084 = vpack.c.b16 %v1044, %v1040
        %v1085 = vpack.c.b16 %v1045, %v1041
        %v1086 = vpack.c.b16 %v1046, %v1042
        %v1087 = vpack.c.b16 %v1051, %v1047
        %v1088 = vpack.c.b16 %v1052, %v1048
        %v1089 = vpack.c.b16 %v1053, %v1049
        %v1090 = vpack.c.b16 %v1054, %v1050
        %v1091 = vpack.c.b16 %v1059, %v1055
        %v1092 = vpack.c.b16 %v1060, %v1056
        %v1093 = vpack.c.b16 %v1061, %v1057
        %v1094 = vpack.c.b16 %v1062, %v1058
        %1127 = vmatprep.subr.bf16.mxu0 %v1092
        %1128 = vmatpush1.bf16.msra.mxu0 %v1091
        %1129 = vmatprep.subr.bf16.mxu0 %v1088
        %1130 = vmatpush1.bf16.msra.mxu0 %v1087
        %1131 = vmatprep.subr.bf16.mxu0 %v1084
        %1132 = vmatpush1.bf16.msra.mxu0 %v1083
        %1133 = vmatprep.subr.bf16.mxu0 %v1080
        %1134 = vmatpush1.bf16.msra.mxu0 %v1079
        %1135 = vmatprep.subr.bf16.mxu0 %v1076
        %1136 = vmatpush1.bf16.msra.mxu0 %v1075
        %1137 = vmatprep.subr.bf16.mxu0 %v1072
        %1138 = vmatpush1.bf16.msra.mxu0 %v1071
        %1139 = vmatprep.subr.bf16.mxu0 %v1068
        %1140 = vmatpush1.bf16.msra.mxu0 %v1067
        %1141 = vmatprep.subr.bf16.mxu0 %v1064
        %1142 = vmatpush1.bf16.msra.mxu0 %v1063
        %1143 = vmatprep.subr.bf16.mxu0 0
        %1144 = vmatpush2.bf16.msra.mxu0 0
        %1145 = vmatprep.subr.bf16.mxu0 0
        %1146 = vmatpush2.bf16.msra.mxu0 0
        %1147 = vmatprep.subr.bf16.mxu0 0
        %1148 = vmatpush2.bf16.msra.mxu0 0
        %1149 = vmatprep.subr.bf16.mxu0 0
        %1150 = vmatpush2.bf16.msra.mxu0 0
        %1151 = vmatprep.subr.bf16.mxu0 0
        %1152 = vmatpush2.bf16.msra.mxu0 0
        %1153 = vmatprep.subr.bf16.mxu0 0
        %1154 = vmatpush2.bf16.msra.mxu0 0
        %1155 = vmatprep.subr.bf16.mxu0 0
        %1156 = vmatpush2.bf16.msra.mxu0 0
        %1157 = vmatprep.subr.bf16.mxu0 0
        %1158 = vmatpush2.bf16.msra.mxu0 0
        %1159 = vmatprep.mubr.bf16.mxu0 0
        %1160 = vmatmul.mubr.bf16.gmra.mxu0 %v966
        %v1161 = vpop.f32.mrf.mxu0
        %v1162 = vadd.f32 0.0, %v1161
        %v1163 = vpop.f32.mrf.mxu0
        %v1164 = vadd.f32 0.0, %v1163
        %v1165 = vpop.f32.mrf.mxu0
        %v1166 = vpop.f32.mrf.mxu0
        %1167 = vdwg.mxu0
        %1168 = vmatprep.subr.bf16.mxu0 %v1094
        %1169 = vmatpush1.bf16.msra.mxu0 %v1093
        %1170 = vmatprep.subr.bf16.mxu0 %v1090
        %1171 = vmatpush1.bf16.msra.mxu0 %v1089
        %1172 = vmatprep.subr.bf16.mxu0 %v1086
        %1173 = vmatpush1.bf16.msra.mxu0 %v1085
        %1174 = vmatprep.subr.bf16.mxu0 %v1082
        %1175 = vmatpush1.bf16.msra.mxu0 %v1081
        %1176 = vmatprep.subr.bf16.mxu0 %v1078
        %1177 = vmatpush1.bf16.msra.mxu0 %v1077
        %1178 = vmatprep.subr.bf16.mxu0 %v1074
        %1179 = vmatpush1.bf16.msra.mxu0 %v1073
        %1180 = vmatprep.subr.bf16.mxu0 %v1070
        %1181 = vmatpush1.bf16.msra.mxu0 %v1069
        %1182 = vmatprep.subr.bf16.mxu0 %v1066
        %1183 = vmatpush1.bf16.msra.mxu0 %v1065
        %1184 = vmatprep.subr.bf16.mxu0 0
        %1185 = vmatpush2.bf16.msra.mxu0 0
        %1186 = vmatprep.subr.bf16.mxu0 0
        %1187 = vmatpush2.bf16.msra.mxu0 0
        %1188 = vmatprep.subr.bf16.mxu0 0
        %1189 = vmatpush2.bf16.msra.mxu0 0
        %1190 = vmatprep.subr.bf16.mxu0 0
        %1191 = vmatpush2.bf16.msra.mxu0 0
        %1192 = vmatprep.subr.bf16.mxu0 0
        %1193 = vmatpush2.bf16.msra.mxu0 0
        %1194 = vmatprep.subr.bf16.mxu0 0
        %1195 = vmatpush2.bf16.msra.mxu0 0
        %1196 = vmatprep.subr.bf16.mxu0 0
        %1197 = vmatpush2.bf16.msra.mxu0 0
        %1198 = vmatprep.subr.bf16.mxu0 0
        %1199 = vmatpush2.bf16.msra.mxu0 0
        %1200 = vmatprep.mubr.bf16.mxu0 0
        %1201 = vmatmul.mubr.bf16.gmra.mxu0 %v966
        %v1202 = vpop.f32.mrf.mxu0
        %v1203 = vadd.f32 0.0, %v1202
        %v1204 = vpop.f32.mrf.mxu0
        %v1205 = vadd.f32 0.0, %v1204
        %v1206 = vpop.f32.mrf.mxu0
        %v1207 = vpop.f32.mrf.mxu0
        %1208 = vdwg.mxu0
        %v1209 = vadd.f32 %v962, %v1162
        %v1210 = vadd.f32 %v963, %v1164
        %v1211 = vadd.f32 %v964, %v1203
        %v1212 = vadd.f32 %v965, %v1205
        %v1213 = vxor.u32 %v1209, 2147483648
        %v1214 = vxor.u32 %v1210, 2147483648
        %v1215 = vxor.u32 %v1211, 2147483648
        %v1216 = vmul.f32 %v1213, 1.442695
        %v1217 = vpow.pop %v1216
        %v1218 = vmul.f32 %v1214, 1.442695
        %v1219 = vpow.pop %v1218
        %v1220 = vmul.f32 %v1215, 1.442695
        %v1221 = vpow.pop %v1220
        %v1222 = vadd.f32 %v1217, 1.0
        %v1223 = vadd.f32 %v1219, 1.0
        %v1224 = vadd.f32 %v1221, 1.0
        %v1225 = vrcp.pop %v1222
        %v1226 = vmul.f32 1.0, %v1225
        %v1227 = vrcp.pop %v1223
        %v1228 = vmul.f32 1.0, %v1227
        %v1229 = vrcp.pop %v1224
        %v1230 = vmul.f32 1.0, %v1229
        %v1231 = vtanh.pop %v1212
        %v1232 = vmul.f32 %v1228, %v931
        %v1233 = vmul.f32 %v1226, %v1231
        %v1234 = vadd.f32 %v1232, %v1233
        %v1235 = vtanh.pop %v1234
        %v1236 = vmul.f32 %v1230, %v1235
        %s1237 = smul.u32 1, 4
        %s1238 = smul.addr %s1237, 4
        %s1239 = scalar_lea.vmem [#allocation2], %s1238
        %v1240 = vld [vmem:[%s1239] sm:$0xff]
        %v1241 = vld [vmem:[%s1239 + $0x8] sm:$0xff]
        %v1242 = vunpack.c.l.bf16 %v1240
        %v1243 = vunpack.c.h.bf16 %v1240
        %v1244 = vunpack.c.l.bf16 %v1241
        %v1245 = vunpack.c.h.bf16 %v1241
        %v1246 = vadd.f32 %v1242, %v945
        %v1247 = vadd.f32 %v1243, %v949
        %v1248 = vadd.f32 %v1244, %v953
        %v1249 = vadd.f32 %v1245, %v957
        %v1250 = vpack.c.bf16 %v1236, %v1236
        %1251 = vmatprep.subr.bf16.mxu0 %v1092
        %1252 = vmatpush1.bf16.msra.mxu0 %v1091
        %1253 = vmatprep.subr.bf16.mxu0 %v1088
        %1254 = vmatpush1.bf16.msra.mxu0 %v1087
        %1255 = vmatprep.subr.bf16.mxu0 %v1084
        %1256 = vmatpush1.bf16.msra.mxu0 %v1083
        %1257 = vmatprep.subr.bf16.mxu0 %v1080
        %1258 = vmatpush1.bf16.msra.mxu0 %v1079
        %1259 = vmatprep.subr.bf16.mxu0 %v1076
        %1260 = vmatpush1.bf16.msra.mxu0 %v1075
        %1261 = vmatprep.subr.bf16.mxu0 %v1072
        %1262 = vmatpush1.bf16.msra.mxu0 %v1071
        %1263 = vmatprep.subr.bf16.mxu0 %v1068
        %1264 = vmatpush1.bf16.msra.mxu0 %v1067
        %1265 = vmatprep.subr.bf16.mxu0 %v1064
        %1266 = vmatpush1.bf16.msra.mxu0 %v1063
        %1267 = vmatprep.subr.bf16.mxu0 0
        %1268 = vmatpush2.bf16.msra.mxu0 0
        %1269 = vmatprep.subr.bf16.mxu0 0
        %1270 = vmatpush2.bf16.msra.mxu0 0
        %1271 = vmatprep.subr.bf16.mxu0 0
        %1272 = vmatpush2.bf16.msra.mxu0 0
        %1273 = vmatprep.subr.bf16.mxu0 0
        %1274 = vmatpush2.bf16.msra.mxu0 0
        %1275 = vmatprep.subr.bf16.mxu0 0
        %1276 = vmatpush2.bf16.msra.mxu0 0
        %1277 = vmatprep.subr.bf16.mxu0 0
        %1278 = vmatpush2.bf16.msra.mxu0 0
        %1279 = vmatprep.subr.bf16.mxu0 0
        %1280 = vmatpush2.bf16.msra.mxu0 0
        %1281 = vmatprep.subr.bf16.mxu0 0
        %1282 = vmatpush2.bf16.msra.mxu0 0
        %1283 = vmatprep.mubr.bf16.mxu0 0
        %1284 = vmatmul.mubr.bf16.gmra.mxu0 %v1250
        %v1285 = vpop.f32.mrf.mxu0
        %v1286 = vadd.f32 0.0, %v1285
        %v1287 = vpop.f32.mrf.mxu0
        %v1288 = vadd.f32 0.0, %v1287
        %v1289 = vpop.f32.mrf.mxu0
        %v1290 = vpop.f32.mrf.mxu0
        %1291 = vdwg.mxu0
        %1292 = vmatprep.subr.bf16.mxu0 %v1094
        %1293 = vmatpush1.bf16.msra.mxu0 %v1093
        %1294 = vmatprep.subr.bf16.mxu0 %v1090
        %1295 = vmatpush1.bf16.msra.mxu0 %v1089
        %1296 = vmatprep.subr.bf16.mxu0 %v1086
        %1297 = vmatpush1.bf16.msra.mxu0 %v1085
        %1298 = vmatprep.subr.bf16.mxu0 %v1082
        %1299 = vmatpush1.bf16.msra.mxu0 %v1081
        %1300 = vmatprep.subr.bf16.mxu0 %v1078
        %1301 = vmatpush1.bf16.msra.mxu0 %v1077
        %1302 = vmatprep.subr.bf16.mxu0 %v1074
        %1303 = vmatpush1.bf16.msra.mxu0 %v1073
        %1304 = vmatprep.subr.bf16.mxu0 %v1070
        %1305 = vmatpush1.bf16.msra.mxu0 %v1069
        %1306 = vmatprep.subr.bf16.mxu0 %v1066
        %1307 = vmatpush1.bf16.msra.mxu0 %v1065
        %1308 = vmatprep.subr.bf16.mxu0 0
        %1309 = vmatpush2.bf16.msra.mxu0 0
        %1310 = vmatprep.subr.bf16.mxu0 0
        %1311 = vmatpush2.bf16.msra.mxu0 0
        %1312 = vmatprep.subr.bf16.mxu0 0
        %1313 = vmatpush2.bf16.msra.mxu0 0
        %1314 = vmatprep.subr.bf16.mxu0 0
        %1315 = vmatpush2.bf16.msra.mxu0 0
        %1316 = vmatprep.subr.bf16.mxu0 0
        %1317 = vmatpush2.bf16.msra.mxu0 0
        %1318 = vmatprep.subr.bf16.mxu0 0
        %1319 = vmatpush2.bf16.msra.mxu0 0
        %1320 = vmatprep.subr.bf16.mxu0 0
        %1321 = vmatpush2.bf16.msra.mxu0 0
        %1322 = vmatprep.subr.bf16.mxu0 0
        %1323 = vmatpush2.bf16.msra.mxu0 0
        %1324 = vmatprep.mubr.bf16.mxu0 0
        %1325 = vmatmul.mubr.bf16.gmra.mxu0 %v1250
        %v1326 = vpop.f32.mrf.mxu0
        %v1327 = vadd.f32 0.0, %v1326
        %v1328 = vpop.f32.mrf.mxu0
        %v1329 = vadd.f32 0.0, %v1328
        %v1330 = vpop.f32.mrf.mxu0
        %v1331 = vpop.f32.mrf.mxu0
        %1332 = vdwg.mxu0
        %v1333 = vadd.f32 %v1246, %v1286
        %v1334 = vadd.f32 %v1247, %v1288
        %v1335 = vadd.f32 %v1248, %v1327
        %v1336 = vadd.f32 %v1249, %v1329
        %v1337 = vxor.u32 %v1333, 2147483648
        %v1338 = vxor.u32 %v1334, 2147483648
        %v1339 = vxor.u32 %v1335, 2147483648
        %v1340 = vmul.f32 %v1337, 1.442695
        %v1341 = vpow.pop %v1340
        %v1342 = vmul.f32 %v1338, 1.442695
        %v1343 = vpow.pop %v1342
        %v1344 = vmul.f32 %v1339, 1.442695
        %v1345 = vpow.pop %v1344
        %v1346 = vadd.f32 %v1341, 1.0
        %v1347 = vadd.f32 %v1343, 1.0
        %v1348 = vadd.f32 %v1345, 1.0
        %v1349 = vrcp.pop %v1346
        %v1350 = vmul.f32 1.0, %v1349
        %v1351 = vrcp.pop %v1347
        %v1352 = vmul.f32 1.0, %v1351
        %v1353 = vrcp.pop %v1348
        %v1354 = vmul.f32 1.0, %v1353
        %v1355 = vtanh.pop %v1336
        %v1356 = vmul.f32 %v1352, %v1234
        %v1357 = vmul.f32 %v1350, %v1355
        %v1358 = vadd.f32 %v1356, %v1357
        %v1359 = vtanh.pop %v1358
        %v1360 = vmul.f32 %v1354, %v1359
        %s1361 = smul.u32 2, 4
        %s1362 = smul.addr %s1361, 4
        %s1363 = scalar_lea.vmem [#allocation2], %s1362
        %v1364 = vld [vmem:[%s1363] sm:$0xff]
        %v1365 = vld [vmem:[%s1363 + $0x8] sm:$0xff]
        %v1366 = vunpack.c.l.bf16 %v1364
        %v1367 = vunpack.c.h.bf16 %v1364
        %v1368 = vunpack.c.l.bf16 %v1365
        %v1369 = vunpack.c.h.bf16 %v1365
        %v1370 = vadd.f32 %v1366, %v945
        %v1371 = vadd.f32 %v1367, %v949
        %v1372 = vadd.f32 %v1368, %v953
        %v1373 = vadd.f32 %v1369, %v957
        %v1374 = vpack.c.bf16 %v1360, %v1360
        %1375 = vmatprep.subr.bf16.mxu0 %v1092
        %1376 = vmatpush1.bf16.msra.mxu0 %v1091
        %1377 = vmatprep.subr.bf16.mxu0 %v1088
        %1378 = vmatpush1.bf16.msra.mxu0 %v1087
        %1379 = vmatprep.subr.bf16.mxu0 %v1084
        %1380 = vmatpush1.bf16.msra.mxu0 %v1083
        %1381 = vmatprep.subr.bf16.mxu0 %v1080
        %1382 = vmatpush1.bf16.msra.mxu0 %v1079
        %1383 = vmatprep.subr.bf16.mxu0 %v1076
        %1384 = vmatpush1.bf16.msra.mxu0 %v1075
        %1385 = vmatprep.subr.bf16.mxu0 %v1072
        %1386 = vmatpush1.bf16.msra.mxu0 %v1071
        %1387 = vmatprep.subr.bf16.mxu0 %v1068
        %1388 = vmatpush1.bf16.msra.mxu0 %v1067
        %1389 = vmatprep.subr.bf16.mxu0 %v1064
        %1390 = vmatpush1.bf16.msra.mxu0 %v1063
        %1391 = vmatprep.subr.bf16.mxu0 0
        %1392 = vmatpush2.bf16.msra.mxu0 0
        %1393 = vmatprep.subr.bf16.mxu0 0
        %1394 = vmatpush2.bf16.msra.mxu0 0
        %1395 = vmatprep.subr.bf16.mxu0 0
        %1396 = vmatpush2.bf16.msra.mxu0 0
        %1397 = vmatprep.subr.bf16.mxu0 0
        %1398 = vmatpush2.bf16.msra.mxu0 0
        %1399 = vmatprep.subr.bf16.mxu0 0
        %1400 = vmatpush2.bf16.msra.mxu0 0
        %1401 = vmatprep.subr.bf16.mxu0 0
        %1402 = vmatpush2.bf16.msra.mxu0 0
        %1403 = vmatprep.subr.bf16.mxu0 0
        %1404 = vmatpush2.bf16.msra.mxu0 0
        %1405 = vmatprep.subr.bf16.mxu0 0
        %1406 = vmatpush2.bf16.msra.mxu0 0
        %1407 = vmatprep.mubr.bf16.mxu0 0
        %1408 = vmatmul.mubr.bf16.gmra.mxu0 %v1374
        %v1409 = vpop.f32.mrf.mxu0
        %v1410 = vadd.f32 0.0, %v1409
        %v1411 = vpop.f32.mrf.mxu0
        %v1412 = vadd.f32 0.0, %v1411
        %v1413 = vpop.f32.mrf.mxu0
        %v1414 = vpop.f32.mrf.mxu0
        %1415 = vdwg.mxu0
        %1416 = vmatprep.subr.bf16.mxu0 %v1094
        %1417 = vmatpush1.bf16.msra.mxu0 %v1093
        %1418 = vmatprep.subr.bf16.mxu0 %v1090
        %1419 = vmatpush1.bf16.msra.mxu0 %v1089
        %1420 = vmatprep.subr.bf16.mxu0 %v1086
        %1421 = vmatpush1.bf16.msra.mxu0 %v1085
        %1422 = vmatprep.subr.bf16.mxu0 %v1082
        %1423 = vmatpush1.bf16.msra.mxu0 %v1081
        %1424 = vmatprep.subr.bf16.mxu0 %v1078
        %1425 = vmatpush1.bf16.msra.mxu0 %v1077
        %1426 = vmatprep.subr.bf16.mxu0 %v1074
        %1427 = vmatpush1.bf16.msra.mxu0 %v1073
        %1428 = vmatprep.subr.bf16.mxu0 %v1070
        %1429 = vmatpush1.bf16.msra.mxu0 %v1069
        %1430 = vmatprep.subr.bf16.mxu0 %v1066
        %1431 = vmatpush1.bf16.msra.mxu0 %v1065
        %1432 = vmatprep.subr.bf16.mxu0 0
        %1433 = vmatpush2.bf16.msra.mxu0 0
        %1434 = vmatprep.subr.bf16.mxu0 0
        %1435 = vmatpush2.bf16.msra.mxu0 0
        %1436 = vmatprep.subr.bf16.mxu0 0
        %1437 = vmatpush2.bf16.msra.mxu0 0
        %1438 = vmatprep.subr.bf16.mxu0 0
        %1439 = vmatpush2.bf16.msra.mxu0 0
        %1440 = vmatprep.subr.bf16.mxu0 0
        %1441 = vmatpush2.bf16.msra.mxu0 0
        %1442 = vmatprep.subr.bf16.mxu0 0
        %1443 = vmatpush2.bf16.msra.mxu0 0
        %1444 = vmatprep.subr.bf16.mxu0 0
        %1445 = vmatpush2.bf16.msra.mxu0 0
        %1446 = vmatprep.subr.bf16.mxu0 0
        %1447 = vmatpush2.bf16.msra.mxu0 0
        %1448 = vmatprep.mubr.bf16.mxu0 0
        %1449 = vmatmul.mubr.bf16.gmra.mxu0 %v1374
        %v1450 = vpop.f32.mrf.mxu0
        %v1451 = vadd.f32 0.0, %v1450
        %v1452 = vpop.f32.mrf.mxu0
        %v1453 = vadd.f32 0.0, %v1452
        %v1454 = vpop.f32.mrf.mxu0
        %v1455 = vpop.f32.mrf.mxu0
        %1456 = vdwg.mxu0
        %v1457 = vadd.f32 %v1370, %v1410
        %v1458 = vadd.f32 %v1371, %v1412
        %v1459 = vadd.f32 %v1372, %v1451
        %v1460 = vadd.f32 %v1373, %v1453
        %v1461 = vxor.u32 %v1457, 2147483648
        %v1462 = vxor.u32 %v1458, 2147483648
        %v1463 = vxor.u32 %v1459, 2147483648
        %v1464 = vmul.f32 %v1461, 1.442695
        %v1465 = vpow.pop %v1464
        %v1466 = vmul.f32 %v1462, 1.442695
        %v1467 = vpow.pop %v1466
        %v1468 = vmul.f32 %v1463, 1.442695
        %v1469 = vpow.pop %v1468
        %v1470 = vadd.f32 %v1465, 1.0
        %v1471 = vadd.f32 %v1467, 1.0
        %v1472 = vadd.f32 %v1469, 1.0
        %v1473 = vrcp.pop %v1470
        %v1474 = vmul.f32 1.0, %v1473
        %v1475 = vrcp.pop %v1471
        %v1476 = vmul.f32 1.0, %v1475
        %v1477 = vrcp.pop %v1472
        %v1478 = vmul.f32 1.0, %v1477
        %v1479 = vtanh.pop %v1460
        %v1480 = vmul.f32 %v1476, %v1358
        %v1481 = vmul.f32 %v1474, %v1479
        %v1482 = vadd.f32 %v1480, %v1481
        %v1483 = vtanh.pop %v1482
        %v1484 = vmul.f32 %v1478, %v1483
        %s1485 = smul.u32 3, 4
        %s1486 = smul.addr %s1485, 4
        %s1487 = scalar_lea.vmem [#allocation2], %s1486
        %v1488 = vld [vmem:[%s1487] sm:$0xff]
        %v1489 = vld [vmem:[%s1487 + $0x8] sm:$0xff]
        %v1490 = vunpack.c.l.bf16 %v1488
        %v1491 = vunpack.c.h.bf16 %v1488
        %v1492 = vunpack.c.l.bf16 %v1489
        %v1493 = vunpack.c.h.bf16 %v1489
        %v1494 = vadd.f32 %v1490, %v945
        %v1495 = vadd.f32 %v1491, %v949
        %v1496 = vadd.f32 %v1492, %v953
        %v1497 = vadd.f32 %v1493, %v957
        %v1498 = vpack.c.bf16 %v1484, %v1484
        %1499 = vmatprep.subr.bf16.mxu0 %v1092
        %1500 = vmatpush1.bf16.msra.mxu0 %v1091
        %1501 = vmatprep.subr.bf16.mxu0 %v1088
        %1502 = vmatpush1.bf16.msra.mxu0 %v1087
        %1503 = vmatprep.subr.bf16.mxu0 %v1084
        %1504 = vmatpush1.bf16.msra.mxu0 %v1083
        %1505 = vmatprep.subr.bf16.mxu0 %v1080
        %1506 = vmatpush1.bf16.msra.mxu0 %v1079
        %1507 = vmatprep.subr.bf16.mxu0 %v1076
        %1508 = vmatpush1.bf16.msra.mxu0 %v1075
        %1509 = vmatprep.subr.bf16.mxu0 %v1072
        %1510 = vmatpush1.bf16.msra.mxu0 %v1071
        %1511 = vmatprep.subr.bf16.mxu0 %v1068
        %1512 = vmatpush1.bf16.msra.mxu0 %v1067
        %1513 = vmatprep.subr.bf16.mxu0 %v1064
        %1514 = vmatpush1.bf16.msra.mxu0 %v1063
        %1515 = vmatprep.subr.bf16.mxu0 0
        %1516 = vmatpush2.bf16.msra.mxu0 0
        %1517 = vmatprep.subr.bf16.mxu0 0
        %1518 = vmatpush2.bf16.msra.mxu0 0
        %1519 = vmatprep.subr.bf16.mxu0 0
        %1520 = vmatpush2.bf16.msra.mxu0 0
        %1521 = vmatprep.subr.bf16.mxu0 0
        %1522 = vmatpush2.bf16.msra.mxu0 0
        %1523 = vmatprep.subr.bf16.mxu0 0
        %1524 = vmatpush2.bf16.msra.mxu0 0
        %1525 = vmatprep.subr.bf16.mxu0 0
        %1526 = vmatpush2.bf16.msra.mxu0 0
        %1527 = vmatprep.subr.bf16.mxu0 0
        %1528 = vmatpush2.bf16.msra.mxu0 0
        %1529 = vmatprep.subr.bf16.mxu0 0
        %1530 = vmatpush2.bf16.msra.mxu0 0
        %1531 = vmatprep.mubr.bf16.mxu0 0
        %1532 = vmatmul.mubr.bf16.gmra.mxu0 %v1498
        %v1533 = vpop.f32.mrf.mxu0
        %v1534 = vadd.f32 0.0, %v1533
        %v1535 = vpop.f32.mrf.mxu0
        %v1536 = vadd.f32 0.0, %v1535
        %v1537 = vpop.f32.mrf.mxu0
        %v1538 = vpop.f32.mrf.mxu0
        %1539 = vdwg.mxu0
        %1540 = vmatprep.subr.bf16.mxu0 %v1094
        %1541 = vmatpush1.bf16.msra.mxu0 %v1093
        %1542 = vmatprep.subr.bf16.mxu0 %v1090
        %1543 = vmatpush1.bf16.msra.mxu0 %v1089
        %1544 = vmatprep.subr.bf16.mxu0 %v1086
        %1545 = vmatpush1.bf16.msra.mxu0 %v1085
        %1546 = vmatprep.subr.bf16.mxu0 %v1082
        %1547 = vmatpush1.bf16.msra.mxu0 %v1081
        %1548 = vmatprep.subr.bf16.mxu0 %v1078
        %1549 = vmatpush1.bf16.msra.mxu0 %v1077
        %1550 = vmatprep.subr.bf16.mxu0 %v1074
        %1551 = vmatpush1.bf16.msra.mxu0 %v1073
        %1552 = vmatprep.subr.bf16.mxu0 %v1070
        %1553 = vmatpush1.bf16.msra.mxu0 %v1069
        %1554 = vmatprep.subr.bf16.mxu0 %v1066
        %1555 = vmatpush1.bf16.msra.mxu0 %v1065
        %1556 = vmatprep.subr.bf16.mxu0 0
        %1557 = vmatpush2.bf16.msra.mxu0 0
        %1558 = vmatprep.subr.bf16.mxu0 0
        %1559 = vmatpush2.bf16.msra.mxu0 0
        %1560 = vmatprep.subr.bf16.mxu0 0
        %1561 = vmatpush2.bf16.msra.mxu0 0
        %1562 = vmatprep.subr.bf16.mxu0 0
        %1563 = vmatpush2.bf16.msra.mxu0 0
        %1564 = vmatprep.subr.bf16.mxu0 0
        %1565 = vmatpush2.bf16.msra.mxu0 0
        %1566 = vmatprep.subr.bf16.mxu0 0
        %1567 = vmatpush2.bf16.msra.mxu0 0
        %1568 = vmatprep.subr.bf16.mxu0 0
        %1569 = vmatpush2.bf16.msra.mxu0 0
        %1570 = vmatprep.subr.bf16.mxu0 0
        %1571 = vmatpush2.bf16.msra.mxu0 0
        %1572 = vmatprep.mubr.bf16.mxu0 0
        %1573 = vmatmul.mubr.bf16.gmra.mxu0 %v1498
        %v1574 = vpop.f32.mrf.mxu0
        %v1575 = vadd.f32 0.0, %v1574
        %v1576 = vpop.f32.mrf.mxu0
        %v1577 = vadd.f32 0.0, %v1576
        %v1578 = vpop.f32.mrf.mxu0
        %v1579 = vpop.f32.mrf.mxu0
        %1580 = vdwg.mxu0
        %v1581 = vadd.f32 %v1494, %v1534
        %v1582 = vadd.f32 %v1495, %v1536
        %v1583 = vadd.f32 %v1496, %v1575
        %v1584 = vadd.f32 %v1497, %v1577
        %v1585 = vxor.u32 %v1581, 2147483648
        %v1586 = vxor.u32 %v1582, 2147483648
        %v1587 = vxor.u32 %v1583, 2147483648
        %v1588 = vmul.f32 %v1585, 1.442695
        %v1589 = vpow.pop %v1588
        %v1590 = vmul.f32 %v1586, 1.442695
        %v1591 = vpow.pop %v1590
        %v1592 = vmul.f32 %v1587, 1.442695
        %v1593 = vpow.pop %v1592
        %v1594 = vadd.f32 %v1589, 1.0
        %v1595 = vadd.f32 %v1591, 1.0
        %v1596 = vadd.f32 %v1593, 1.0
        %v1597 = vrcp.pop %v1594
        %v1598 = vmul.f32 1.0, %v1597
        %v1599 = vrcp.pop %v1595
        %v1600 = vmul.f32 1.0, %v1599
        %v1601 = vrcp.pop %v1596
        %v1602 = vmul.f32 1.0, %v1601
        %v1603 = vtanh.pop %v1584
        %v1604 = vmul.f32 %v1600, %v1482
        %v1605 = vmul.f32 %v1598, %v1603
        %v1606 = vadd.f32 %v1604, %v1605
        %v1607 = vtanh.pop %v1606
        %v1608 = vmul.f32 %v1602, %v1607
        %s1609 = smul.u32 4, 4
        %s1610 = smul.addr %s1609, 4
        %s1611 = scalar_lea.vmem [#allocation2], %s1610
        %v1612 = vld [vmem:[%s1611] sm:$0xff]
        %v1613 = vld [vmem:[%s1611 + $0x8] sm:$0xff]
        %v1614 = vunpack.c.l.bf16 %v1612
        %v1615 = vunpack.c.h.bf16 %v1612
        %v1616 = vunpack.c.l.bf16 %v1613
        %v1617 = vunpack.c.h.bf16 %v1613
        %v1618 = vadd.f32 %v1614, %v945
        %v1619 = vadd.f32 %v1615, %v949
        %v1620 = vadd.f32 %v1616, %v953
        %v1621 = vadd.f32 %v1617, %v957
        %v1622 = vpack.c.bf16 %v1608, %v1608
        %1623 = vmatprep.subr.bf16.mxu0 %v1092
        %1624 = vmatpush1.bf16.msra.mxu0 %v1091
        %1625 = vmatprep.subr.bf16.mxu0 %v1088
        %1626 = vmatpush1.bf16.msra.mxu0 %v1087
        %1627 = vmatprep.subr.bf16.mxu0 %v1084
        %1628 = vmatpush1.bf16.msra.mxu0 %v1083
        %1629 = vmatprep.subr.bf16.mxu0 %v1080
        %1630 = vmatpush1.bf16.msra.mxu0 %v1079
        %1631 = vmatprep.subr.bf16.mxu0 %v1076
        %1632 = vmatpush1.bf16.msra.mxu0 %v1075
        %1633 = vmatprep.subr.bf16.mxu0 %v1072
        %1634 = vmatpush1.bf16.msra.mxu0 %v1071
        %1635 = vmatprep.subr.bf16.mxu0 %v1068
        %1636 = vmatpush1.bf16.msra.mxu0 %v1067
        %1637 = vmatprep.subr.bf16.mxu0 %v1064
        %1638 = vmatpush1.bf16.msra.mxu0 %v1063
        %1639 = vmatprep.subr.bf16.mxu0 0
        %1640 = vmatpush2.bf16.msra.mxu0 0
        %1641 = vmatprep.subr.bf16.mxu0 0
        %1642 = vmatpush2.bf16.msra.mxu0 0
        %1643 = vmatprep.subr.bf16.mxu0 0
        %1644 = vmatpush2.bf16.msra.mxu0 0
        %1645 = vmatprep.subr.bf16.mxu0 0
        %1646 = vmatpush2.bf16.msra.mxu0 0
        %1647 = vmatprep.subr.bf16.mxu0 0
        %1648 = vmatpush2.bf16.msra.mxu0 0
        %1649 = vmatprep.subr.bf16.mxu0 0
        %1650 = vmatpush2.bf16.msra.mxu0 0
        %1651 = vmatprep.subr.bf16.mxu0 0
        %1652 = vmatpush2.bf16.msra.mxu0 0
        %1653 = vmatprep.subr.bf16.mxu0 0
        %1654 = vmatpush2.bf16.msra.mxu0 0
        %1655 = vmatprep.mubr.bf16.mxu0 0
        %1656 = vmatmul.mubr.bf16.gmra.mxu0 %v1622
        %v1657 = vpop.f32.mrf.mxu0
        %v1658 = vadd.f32 0.0, %v1657
        %v1659 = vpop.f32.mrf.mxu0
        %v1660 = vadd.f32 0.0, %v1659
        %v1661 = vpop.f32.mrf.mxu0
        %v1662 = vpop.f32.mrf.mxu0
        %1663 = vdwg.mxu0
        %1664 = vmatprep.subr.bf16.mxu0 %v1094
        %1665 = vmatpush1.bf16.msra.mxu0 %v1093
        %1666 = vmatprep.subr.bf16.mxu0 %v1090
        %1667 = vmatpush1.bf16.msra.mxu0 %v1089
        %1668 = vmatprep.subr.bf16.mxu0 %v1086
        %1669 = vmatpush1.bf16.msra.mxu0 %v1085
        %1670 = vmatprep.subr.bf16.mxu0 %v1082
        %1671 = vmatpush1.bf16.msra.mxu0 %v1081
        %1672 = vmatprep.subr.bf16.mxu0 %v1078
        %1673 = vmatpush1.bf16.msra.mxu0 %v1077
        %1674 = vmatprep.subr.bf16.mxu0 %v1074
        %1675 = vmatpush1.bf16.msra.mxu0 %v1073
        %1676 = vmatprep.subr.bf16.mxu0 %v1070
        %1677 = vmatpush1.bf16.msra.mxu0 %v1069
        %1678 = vmatprep.subr.bf16.mxu0 %v1066
        %1679 = vmatpush1.bf16.msra.mxu0 %v1065
        %1680 = vmatprep.subr.bf16.mxu0 0
        %1681 = vmatpush2.bf16.msra.mxu0 0
        %1682 = vmatprep.subr.bf16.mxu0 0
        %1683 = vmatpush2.bf16.msra.mxu0 0
        %1684 = vmatprep.subr.bf16.mxu0 0
        %1685 = vmatpush2.bf16.msra.mxu0 0
        %1686 = vmatprep.subr.bf16.mxu0 0
        %1687 = vmatpush2.bf16.msra.mxu0 0
        %1688 = vmatprep.subr.bf16.mxu0 0
        %1689 = vmatpush2.bf16.msra.mxu0 0
        %1690 = vmatprep.subr.bf16.mxu0 0
        %1691 = vmatpush2.bf16.msra.mxu0 0
        %1692 = vmatprep.subr.bf16.mxu0 0
        %1693 = vmatpush2.bf16.msra.mxu0 0
        %1694 = vmatprep.subr.bf16.mxu0 0
        %1695 = vmatpush2.bf16.msra.mxu0 0
        %1696 = vmatprep.mubr.bf16.mxu0 0
        %1697 = vmatmul.mubr.bf16.gmra.mxu0 %v1622
        %v1698 = vpop.f32.mrf.mxu0
        %v1699 = vadd.f32 0.0, %v1698
        %v1700 = vpop.f32.mrf.mxu0
        %v1701 = vadd.f32 0.0, %v1700
        %v1702 = vpop.f32.mrf.mxu0
        %v1703 = vpop.f32.mrf.mxu0
        %1704 = vdwg.mxu0
        %v1705 = vadd.f32 %v1618, %v1658
        %v1706 = vadd.f32 %v1619, %v1660
        %v1707 = vadd.f32 %v1620, %v1699
        %v1708 = vadd.f32 %v1621, %v1701
        %v1709 = vxor.u32 %v1705, 2147483648
        %v1710 = vxor.u32 %v1706, 2147483648
        %v1711 = vxor.u32 %v1707, 2147483648
        %v1712 = vmul.f32 %v1709, 1.442695
        %v1713 = vpow.pop %v1712
        %v1714 = vmul.f32 %v1710, 1.442695
        %v1715 = vpow.pop %v1714
        %v1716 = vmul.f32 %v1711, 1.442695
        %v1717 = vpow.pop %v1716
        %v1718 = vadd.f32 %v1713, 1.0
        %v1719 = vadd.f32 %v1715, 1.0
        %v1720 = vadd.f32 %v1717, 1.0
        %v1721 = vrcp.pop %v1718
        %v1722 = vmul.f32 1.0, %v1721
        %v1723 = vrcp.pop %v1719
        %v1724 = vmul.f32 1.0, %v1723
        %v1725 = vrcp.pop %v1720
        %v1726 = vmul.f32 1.0, %v1725
        %v1727 = vtanh.pop %v1708
        %v1728 = vmul.f32 %v1724, %v1606
        %v1729 = vmul.f32 %v1722, %v1727
        %v1730 = vadd.f32 %v1728, %v1729
        %v1731 = vtanh.pop %v1730
        %v1732 = vmul.f32 %v1726, %v1731
        %s1733 = smul.u32 5, 4
        %s1734 = smul.addr %s1733, 4
        %s1735 = scalar_lea.vmem [#allocation2], %s1734
        %v1736 = vld [vmem:[%s1735] sm:$0xff]
        %v1737 = vld [vmem:[%s1735 + $0x8] sm:$0xff]
        %v1738 = vunpack.c.l.bf16 %v1736
        %v1739 = vunpack.c.h.bf16 %v1736
        %v1740 = vunpack.c.l.bf16 %v1737
        %v1741 = vunpack.c.h.bf16 %v1737
        %v1742 = vadd.f32 %v1738, %v945
        %v1743 = vadd.f32 %v1739, %v949
        %v1744 = vadd.f32 %v1740, %v953
        %v1745 = vadd.f32 %v1741, %v957
        %v1746 = vpack.c.bf16 %v1732, %v1732
        %1747 = vmatprep.subr.bf16.mxu0 %v1092
        %1748 = vmatpush1.bf16.msra.mxu0 %v1091
        %1749 = vmatprep.subr.bf16.mxu0 %v1088
        %1750 = vmatpush1.bf16.msra.mxu0 %v1087
        %1751 = vmatprep.subr.bf16.mxu0 %v1084
        %1752 = vmatpush1.bf16.msra.mxu0 %v1083
        %1753 = vmatprep.subr.bf16.mxu0 %v1080
        %1754 = vmatpush1.bf16.msra.mxu0 %v1079
        %1755 = vmatprep.subr.bf16.mxu0 %v1076
        %1756 = vmatpush1.bf16.msra.mxu0 %v1075
        %1757 = vmatprep.subr.bf16.mxu0 %v1072
        %1758 = vmatpush1.bf16.msra.mxu0 %v1071
        %1759 = vmatprep.subr.bf16.mxu0 %v1068
        %1760 = vmatpush1.bf16.msra.mxu0 %v1067
        %1761 = vmatprep.subr.bf16.mxu0 %v1064
        %1762 = vmatpush1.bf16.msra.mxu0 %v1063
        %1763 = vmatprep.subr.bf16.mxu0 0
        %1764 = vmatpush2.bf16.msra.mxu0 0
        %1765 = vmatprep.subr.bf16.mxu0 0
        %1766 = vmatpush2.bf16.msra.mxu0 0
        %1767 = vmatprep.subr.bf16.mxu0 0
        %1768 = vmatpush2.bf16.msra.mxu0 0
        %1769 = vmatprep.subr.bf16.mxu0 0
        %1770 = vmatpush2.bf16.msra.mxu0 0
        %1771 = vmatprep.subr.bf16.mxu0 0
        %1772 = vmatpush2.bf16.msra.mxu0 0
        %1773 = vmatprep.subr.bf16.mxu0 0
        %1774 = vmatpush2.bf16.msra.mxu0 0
        %1775 = vmatprep.subr.bf16.mxu0 0
        %1776 = vmatpush2.bf16.msra.mxu0 0
        %1777 = vmatprep.subr.bf16.mxu0 0
        %1778 = vmatpush2.bf16.msra.mxu0 0
        %1779 = vmatprep.mubr.bf16.mxu0 0
        %1780 = vmatmul.mubr.bf16.gmra.mxu0 %v1746
        %v1781 = vpop.f32.mrf.mxu0
        %v1782 = vadd.f32 0.0, %v1781
        %v1783 = vpop.f32.mrf.mxu0
        %v1784 = vadd.f32 0.0, %v1783
        %v1785 = vpop.f32.mrf.mxu0
        %v1786 = vpop.f32.mrf.mxu0
        %1787 = vdwg.mxu0
        %1788 = vmatprep.subr.bf16.mxu0 %v1094
        %1789 = vmatpush1.bf16.msra.mxu0 %v1093
        %1790 = vmatprep.subr.bf16.mxu0 %v1090
        %1791 = vmatpush1.bf16.msra.mxu0 %v1089
        %1792 = vmatprep.subr.bf16.mxu0 %v1086
        %1793 = vmatpush1.bf16.msra.mxu0 %v1085
        %1794 = vmatprep.subr.bf16.mxu0 %v1082
        %1795 = vmatpush1.bf16.msra.mxu0 %v1081
        %1796 = vmatprep.subr.bf16.mxu0 %v1078
        %1797 = vmatpush1.bf16.msra.mxu0 %v1077
        %1798 = vmatprep.subr.bf16.mxu0 %v1074
        %1799 = vmatpush1.bf16.msra.mxu0 %v1073
        %1800 = vmatprep.subr.bf16.mxu0 %v1070
        %1801 = vmatpush1.bf16.msra.mxu0 %v1069
        %1802 = vmatprep.subr.bf16.mxu0 %v1066
        %1803 = vmatpush1.bf16.msra.mxu0 %v1065
        %1804 = vmatprep.subr.bf16.mxu0 0
        %1805 = vmatpush2.bf16.msra.mxu0 0
        %1806 = vmatprep.subr.bf16.mxu0 0
        %1807 = vmatpush2.bf16.msra.mxu0 0
        %1808 = vmatprep.subr.bf16.mxu0 0
        %1809 = vmatpush2.bf16.msra.mxu0 0
        %1810 = vmatprep.subr.bf16.mxu0 0
        %1811 = vmatpush2.bf16.msra.mxu0 0
        %1812 = vmatprep.subr.bf16.mxu0 0
        %1813 = vmatpush2.bf16.msra.mxu0 0
        %1814 = vmatprep.subr.bf16.mxu0 0
        %1815 = vmatpush2.bf16.msra.mxu0 0
        %1816 = vmatprep.subr.bf16.mxu0 0
        %1817 = vmatpush2.bf16.msra.mxu0 0
        %1818 = vmatprep.subr.bf16.mxu0 0
        %1819 = vmatpush2.bf16.msra.mxu0 0
        %1820 = vmatprep.mubr.bf16.mxu0 0
        %1821 = vmatmul.mubr.bf16.gmra.mxu0 %v1746
        %v1822 = vpop.f32.mrf.mxu0
        %v1823 = vadd.f32 0.0, %v1822
        %v1824 = vpop.f32.mrf.mxu0
        %v1825 = vadd.f32 0.0, %v1824
        %v1826 = vpop.f32.mrf.mxu0
        %v1827 = vpop.f32.mrf.mxu0
        %1828 = vdwg.mxu0
        %v1829 = vadd.f32 %v1742, %v1782
        %v1830 = vadd.f32 %v1743, %v1784
        %v1831 = vadd.f32 %v1744, %v1823
        %v1832 = vadd.f32 %v1745, %v1825
        %v1833 = vxor.u32 %v1829, 2147483648
        %v1834 = vxor.u32 %v1830, 2147483648
        %v1835 = vxor.u32 %v1831, 2147483648
        %v1836 = vmul.f32 %v1833, 1.442695
        %v1837 = vpow.pop %v1836
        %v1838 = vmul.f32 %v1834, 1.442695
        %v1839 = vpow.pop %v1838
        %v1840 = vmul.f32 %v1835, 1.442695
        %v1841 = vpow.pop %v1840
        %v1842 = vadd.f32 %v1837, 1.0
        %v1843 = vadd.f32 %v1839, 1.0
        %v1844 = vadd.f32 %v1841, 1.0
        %v1845 = vrcp.pop %v1842
        %v1846 = vmul.f32 1.0, %v1845
        %v1847 = vrcp.pop %v1843
        %v1848 = vmul.f32 1.0, %v1847
        %v1849 = vrcp.pop %v1844
        %v1850 = vmul.f32 1.0, %v1849
        %v1851 = vtanh.pop %v1832
        %v1852 = vmul.f32 %v1848, %v1730
        %v1853 = vmul.f32 %v1846, %v1851
        %v1854 = vadd.f32 %v1852, %v1853
        %v1855 = vtanh.pop %v1854
        %v1856 = vmul.f32 %v1850, %v1855
        %s1857 = smul.u32 6, 4
        %s1858 = smul.addr %s1857, 4
        %s1859 = scalar_lea.vmem [#allocation2], %s1858
        %v1860 = vld [vmem:[%s1859] sm:$0xff]
        %v1861 = vld [vmem:[%s1859 + $0x8] sm:$0xff]
        %v1862 = vunpack.c.l.bf16 %v1860
        %v1863 = vunpack.c.h.bf16 %v1860
        %v1864 = vunpack.c.l.bf16 %v1861
        %v1865 = vunpack.c.h.bf16 %v1861
        %v1866 = vadd.f32 %v1862, %v945
        %v1867 = vadd.f32 %v1863, %v949
        %v1868 = vadd.f32 %v1864, %v953
        %v1869 = vadd.f32 %v1865, %v957
        %v1870 = vpack.c.bf16 %v1856, %v1856
        %1871 = vmatprep.subr.bf16.mxu0 %v1092
        %1872 = vmatpush1.bf16.msra.mxu0 %v1091
        %1873 = vmatprep.subr.bf16.mxu0 %v1088
        %1874 = vmatpush1.bf16.msra.mxu0 %v1087
        %1875 = vmatprep.subr.bf16.mxu0 %v1084
        %1876 = vmatpush1.bf16.msra.mxu0 %v1083
        %1877 = vmatprep.subr.bf16.mxu0 %v1080
        %1878 = vmatpush1.bf16.msra.mxu0 %v1079
        %1879 = vmatprep.subr.bf16.mxu0 %v1076
        %1880 = vmatpush1.bf16.msra.mxu0 %v1075
        %1881 = vmatprep.subr.bf16.mxu0 %v1072
        %1882 = vmatpush1.bf16.msra.mxu0 %v1071
        %1883 = vmatprep.subr.bf16.mxu0 %v1068
        %1884 = vmatpush1.bf16.msra.mxu0 %v1067
        %1885 = vmatprep.subr.bf16.mxu0 %v1064
        %1886 = vmatpush1.bf16.msra.mxu0 %v1063
        %1887 = vmatprep.subr.bf16.mxu0 0
        %1888 = vmatpush2.bf16.msra.mxu0 0
        %1889 = vmatprep.subr.bf16.mxu0 0
        %1890 = vmatpush2.bf16.msra.mxu0 0
        %1891 = vmatprep.subr.bf16.mxu0 0
        %1892 = vmatpush2.bf16.msra.mxu0 0
        %1893 = vmatprep.subr.bf16.mxu0 0
        %1894 = vmatpush2.bf16.msra.mxu0 0
        %1895 = vmatprep.subr.bf16.mxu0 0
        %1896 = vmatpush2.bf16.msra.mxu0 0
        %1897 = vmatprep.subr.bf16.mxu0 0
        %1898 = vmatpush2.bf16.msra.mxu0 0
        %1899 = vmatprep.subr.bf16.mxu0 0
        %1900 = vmatpush2.bf16.msra.mxu0 0
        %1901 = vmatprep.subr.bf16.mxu0 0
        %1902 = vmatpush2.bf16.msra.mxu0 0
        %1903 = vmatprep.mubr.bf16.mxu0 0
        %1904 = vmatmul.mubr.bf16.gmra.mxu0 %v1870
        %v1905 = vpop.f32.mrf.mxu0
        %v1906 = vadd.f32 0.0, %v1905
        %v1907 = vpop.f32.mrf.mxu0
        %v1908 = vadd.f32 0.0, %v1907
        %v1909 = vpop.f32.mrf.mxu0
        %v1910 = vpop.f32.mrf.mxu0
        %1911 = vdwg.mxu0
        %1912 = vmatprep.subr.bf16.mxu0 %v1094
        %1913 = vmatpush1.bf16.msra.mxu0 %v1093
        %1914 = vmatprep.subr.bf16.mxu0 %v1090
        %1915 = vmatpush1.bf16.msra.mxu0 %v1089
        %1916 = vmatprep.subr.bf16.mxu0 %v1086
        %1917 = vmatpush1.bf16.msra.mxu0 %v1085
        %1918 = vmatprep.subr.bf16.mxu0 %v1082
        %1919 = vmatpush1.bf16.msra.mxu0 %v1081
        %1920 = vmatprep.subr.bf16.mxu0 %v1078
        %1921 = vmatpush1.bf16.msra.mxu0 %v1077
        %1922 = vmatprep.subr.bf16.mxu0 %v1074
        %1923 = vmatpush1.bf16.msra.mxu0 %v1073
        %1924 = vmatprep.subr.bf16.mxu0 %v1070
        %1925 = vmatpush1.bf16.msra.mxu0 %v1069
        %1926 = vmatprep.subr.bf16.mxu0 %v1066
        %1927 = vmatpush1.bf16.msra.mxu0 %v1065
        %1928 = vmatprep.subr.bf16.mxu0 0
        %1929 = vmatpush2.bf16.msra.mxu0 0
        %1930 = vmatprep.subr.bf16.mxu0 0
        %1931 = vmatpush2.bf16.msra.mxu0 0
        %1932 = vmatprep.subr.bf16.mxu0 0
        %1933 = vmatpush2.bf16.msra.mxu0 0
        %1934 = vmatprep.subr.bf16.mxu0 0
        %1935 = vmatpush2.bf16.msra.mxu0 0
        %1936 = vmatprep.subr.bf16.mxu0 0
        %1937 = vmatpush2.bf16.msra.mxu0 0
        %1938 = vmatprep.subr.bf16.mxu0 0
        %1939 = vmatpush2.bf16.msra.mxu0 0
        %1940 = vmatprep.subr.bf16.mxu0 0
        %1941 = vmatpush2.bf16.msra.mxu0 0
        %1942 = vmatprep.subr.bf16.mxu0 0
        %1943 = vmatpush2.bf16.msra.mxu0 0
        %1944 = vmatprep.mubr.bf16.mxu0 0
        %1945 = vmatmul.mubr.bf16.gmra.mxu0 %v1870
        %v1946 = vpop.f32.mrf.mxu0
        %v1947 = vadd.f32 0.0, %v1946
        %v1948 = vpop.f32.mrf.mxu0
        %v1949 = vadd.f32 0.0, %v1948
        %v1950 = vpop.f32.mrf.mxu0
        %v1951 = vpop.f32.mrf.mxu0
        %1952 = vdwg.mxu0
        %v1953 = vadd.f32 %v1866, %v1906
        %v1954 = vadd.f32 %v1867, %v1908
        %v1955 = vadd.f32 %v1868, %v1947
        %v1956 = vadd.f32 %v1869, %v1949
        %v1957 = vxor.u32 %v1953, 2147483648
        %v1958 = vxor.u32 %v1954, 2147483648
        %v1959 = vxor.u32 %v1955, 2147483648
        %v1960 = vmul.f32 %v1957, 1.442695
        %v1961 = vpow.pop %v1960
        %v1962 = vmul.f32 %v1958, 1.442695
        %v1963 = vpow.pop %v1962
        %v1964 = vmul.f32 %v1959, 1.442695
        %v1965 = vpow.pop %v1964
        %v1966 = vadd.f32 %v1961, 1.0
        %v1967 = vadd.f32 %v1963, 1.0
        %v1968 = vadd.f32 %v1965, 1.0
        %v1969 = vrcp.pop %v1966
        %v1970 = vmul.f32 1.0, %v1969
        %v1971 = vrcp.pop %v1967
        %v1972 = vmul.f32 1.0, %v1971
        %v1973 = vrcp.pop %v1968
        %v1974 = vmul.f32 1.0, %v1973
        %v1975 = vtanh.pop %v1956
        %v1976 = vmul.f32 %v1972, %v1854
        %v1977 = vmul.f32 %v1970, %v1975
        %v1978 = vadd.f32 %v1976, %v1977
        %v1979 = vtanh.pop %v1978
        %v1980 = vmul.f32 %v1974, %v1979
        %s1981 = smul.u32 7, 4
        %s1982 = smul.addr %s1981, 4
        %s1983 = scalar_lea.vmem [#allocation2], %s1982
        %v1984 = vld [vmem:[%s1983] sm:$0xff]
        %v1985 = vld [vmem:[%s1983 + $0x8] sm:$0xff]
        %v1986 = vunpack.c.l.bf16 %v1984
        %v1987 = vunpack.c.h.bf16 %v1984
        %v1988 = vunpack.c.l.bf16 %v1985
        %v1989 = vunpack.c.h.bf16 %v1985
        %v1990 = vadd.f32 %v1986, %v945
        %v1991 = vadd.f32 %v1987, %v949
        %v1992 = vadd.f32 %v1988, %v953
        %v1993 = vadd.f32 %v1989, %v957
        %v1994 = vpack.c.bf16 %v1980, %v1980
        %1995 = vmatprep.subr.bf16.mxu0 %v1092
        %1996 = vmatpush1.bf16.msra.mxu0 %v1091
        %1997 = vmatprep.subr.bf16.mxu0 %v1088
        %1998 = vmatpush1.bf16.msra.mxu0 %v1087
        %1999 = vmatprep.subr.bf16.mxu0 %v1084
        %2000 = vmatpush1.bf16.msra.mxu0 %v1083
        %2001 = vmatprep.subr.bf16.mxu0 %v1080
        %2002 = vmatpush1.bf16.msra.mxu0 %v1079
        %2003 = vmatprep.subr.bf16.mxu0 %v1076
        %2004 = vmatpush1.bf16.msra.mxu0 %v1075
        %2005 = vmatprep.subr.bf16.mxu0 %v1072
        %2006 = vmatpush1.bf16.msra.mxu0 %v1071
        %2007 = vmatprep.subr.bf16.mxu0 %v1068
        %2008 = vmatpush1.bf16.msra.mxu0 %v1067
        %2009 = vmatprep.subr.bf16.mxu0 %v1064
        %2010 = vmatpush1.bf16.msra.mxu0 %v1063
        %2011 = vmatprep.subr.bf16.mxu0 0
        %2012 = vmatpush2.bf16.msra.mxu0 0
        %2013 = vmatprep.subr.bf16.mxu0 0
        %2014 = vmatpush2.bf16.msra.mxu0 0
        %2015 = vmatprep.subr.bf16.mxu0 0
        %2016 = vmatpush2.bf16.msra.mxu0 0
        %2017 = vmatprep.subr.bf16.mxu0 0
        %2018 = vmatpush2.bf16.msra.mxu0 0
        %2019 = vmatprep.subr.bf16.mxu0 0
        %2020 = vmatpush2.bf16.msra.mxu0 0
        %2021 = vmatprep.subr.bf16.mxu0 0
        %2022 = vmatpush2.bf16.msra.mxu0 0
        %2023 = vmatprep.subr.bf16.mxu0 0
        %2024 = vmatpush2.bf16.msra.mxu0 0
        %2025 = vmatprep.subr.bf16.mxu0 0
        %2026 = vmatpush2.bf16.msra.mxu0 0
        %2027 = vmatprep.mubr.bf16.mxu0 0
        %2028 = vmatmul.mubr.bf16.gmra.mxu0 %v1994
        %v2029 = vpop.f32.mrf.mxu0
        %v2030 = vadd.f32 0.0, %v2029
        %v2031 = vpop.f32.mrf.mxu0
        %v2032 = vadd.f32 0.0, %v2031
        %v2033 = vpop.f32.mrf.mxu0
        %v2034 = vpop.f32.mrf.mxu0
        %2035 = vdwg.mxu0
        %2036 = vmatprep.subr.bf16.mxu0 %v1094
        %2037 = vmatpush1.bf16.msra.mxu0 %v1093
        %2038 = vmatprep.subr.bf16.mxu0 %v1090
        %2039 = vmatpush1.bf16.msra.mxu0 %v1089
        %2040 = vmatprep.subr.bf16.mxu0 %v1086
        %2041 = vmatpush1.bf16.msra.mxu0 %v1085
        %2042 = vmatprep.subr.bf16.mxu0 %v1082
        %2043 = vmatpush1.bf16.msra.mxu0 %v1081
        %2044 = vmatprep.subr.bf16.mxu0 %v1078
        %2045 = vmatpush1.bf16.msra.mxu0 %v1077
        %2046 = vmatprep.subr.bf16.mxu0 %v1074
        %2047 = vmatpush1.bf16.msra.mxu0 %v1073
        %2048 = vmatprep.subr.bf16.mxu0 %v1070
        %2049 = vmatpush1.bf16.msra.mxu0 %v1069
        %2050 = vmatprep.subr.bf16.mxu0 %v1066
        %2051 = vmatpush1.bf16.msra.mxu0 %v1065
        %2052 = vmatprep.subr.bf16.mxu0 0
        %2053 = vmatpush2.bf16.msra.mxu0 0
        %2054 = vmatprep.subr.bf16.mxu0 0
        %2055 = vmatpush2.bf16.msra.mxu0 0
        %2056 = vmatprep.subr.bf16.mxu0 0
        %2057 = vmatpush2.bf16.msra.mxu0 0
        %2058 = vmatprep.subr.bf16.mxu0 0
        %2059 = vmatpush2.bf16.msra.mxu0 0
        %2060 = vmatprep.subr.bf16.mxu0 0
        %2061 = vmatpush2.bf16.msra.mxu0 0
        %2062 = vmatprep.subr.bf16.mxu0 0
        %2063 = vmatpush2.bf16.msra.mxu0 0
        %2064 = vmatprep.subr.bf16.mxu0 0
        %2065 = vmatpush2.bf16.msra.mxu0 0
        %2066 = vmatprep.subr.bf16.mxu0 0
        %2067 = vmatpush2.bf16.msra.mxu0 0
        %2068 = vmatprep.mubr.bf16.mxu0 0
        %2069 = vmatmul.mubr.bf16.gmra.mxu0 %v1994
        %v2070 = vpop.f32.mrf.mxu0
        %v2071 = vadd.f32 0.0, %v2070
        %v2072 = vpop.f32.mrf.mxu0
        %v2073 = vadd.f32 0.0, %v2072
        %v2074 = vpop.f32.mrf.mxu0
        %v2075 = vpop.f32.mrf.mxu0
        %2076 = vdwg.mxu0
        %v2077 = vadd.f32 %v1990, %v2030
        %v2078 = vadd.f32 %v1991, %v2032
        %v2079 = vadd.f32 %v1992, %v2071
        %v2080 = vadd.f32 %v1993, %v2073
        %v2081 = vxor.u32 %v2077, 2147483648
        %v2082 = vxor.u32 %v2078, 2147483648
        %v2083 = vxor.u32 %v2079, 2147483648
        %v2084 = vmul.f32 %v2081, 1.442695
        %v2085 = vpow.pop %v2084
        %v2086 = vmul.f32 %v2082, 1.442695
        %v2087 = vpow.pop %v2086
        %v2088 = vmul.f32 %v2083, 1.442695
        %v2089 = vpow.pop %v2088
        %v2090 = vadd.f32 %v2085, 1.0
        %v2091 = vadd.f32 %v2087, 1.0
        %v2092 = vadd.f32 %v2089, 1.0
        %v2093 = vrcp.pop %v2090
        %v2094 = vmul.f32 1.0, %v2093
        %v2095 = vrcp.pop %v2091
        %v2096 = vmul.f32 1.0, %v2095
        %v2097 = vrcp.pop %v2092
        %v2098 = vmul.f32 1.0, %v2097
        %v2099 = vtanh.pop %v2080
        %v2100 = vmul.f32 %v2096, %v1978
        %v2101 = vmul.f32 %v2094, %v2099
        %v2102 = vadd.f32 %v2100, %v2101
        %v2103 = vtanh.pop %v2102
        %v2104 = vmul.f32 %v2098, %v2103
        %2105 = vst [vmem:[#allocation3] sm:$0xff] %v2104
        %2106 = vst [vmem:[#allocation4] sm:$0xff] %v2102
        %p2107 = scmp.eq.s32.totalorder %s28, 1
        // Predicated region
        $region65: #{tpu_custom_call.1} parent=43 // pred_check
          %p2108 = pneg %p2107
        $region66: #{tpu_custom_call.1} parent=43 // pred_check_branch
          %2110 = sbr.rel (%p2108) target = $region68
        $region67: #{tpu_custom_call.1} parent=43 // pred_region
          %v2111 = vpack.c.bf16 %v2104, %v2104
          %v2112 = vld [vmem:[#allocation11] sm:$0xf]
          %v2113 = vld [vmem:[#allocation11 + $0x4] sm:$0xf]
          %v2114 = vld [vmem:[#allocation11 + $0x8] sm:$0xf]
          %v2115 = vld [vmem:[#allocation11 + $0xc] sm:$0xf]
          %v2116 = vld [vmem:[#allocation11 + $0x10] sm:$0xf]
          %v2117 = vld [vmem:[#allocation11 + $0x14] sm:$0xf]
          %v2118 = vld [vmem:[#allocation11 + $0x18] sm:$0xf]
          %v2119 = vld [vmem:[#allocation11 + $0x1c] sm:$0xf]
          %v2120 = vld [vmem:[#allocation11 + $0x20] sm:$0xf]
          %v2121 = vld [vmem:[#allocation11 + $0x24] sm:$0xf]
          %v2122 = vld [vmem:[#allocation11 + $0x28] sm:$0xf]
          %v2123 = vld [vmem:[#allocation11 + $0x2c] sm:$0xf]
          %v2124 = vld [vmem:[#allocation11 + $0x30] sm:$0xf]
          %v2125 = vld [vmem:[#allocation11 + $0x34] sm:$0xf]
          %v2126 = vld [vmem:[#allocation11 + $0x38] sm:$0xf]
          %v2127 = vld [vmem:[#allocation11 + $0x3c] sm:$0xf]
          %v2128 = vld [vmem:[%s5] sm:$0x1]
          %v2130 = vlaneseq
          %v2131 = vshrl.u32 %v2130, 7
          %v2132 = vsub.s32 0, %v2131
          %v2133 = vrot.slane %v2128, %v2132
          %v2151 = vunpack.c.l.b16 %v2112
          %v2152 = vunpack.c.l.b16 %v2113
          %v2153 = vunpack.c.l.b16 %v2114
          %v2154 = vunpack.c.l.b16 %v2115
          %v2155 = vunpack.c.l.b16 %v2116
          %v2156 = vunpack.c.l.b16 %v2117
          %v2157 = vunpack.c.l.b16 %v2118
          %v2158 = vunpack.c.l.b16 %v2119
          %v2159 = vunpack.c.l.b16 %v2120
          %v2160 = vunpack.c.l.b16 %v2121
          %v2161 = vunpack.c.l.b16 %v2122
          %v2162 = vunpack.c.l.b16 %v2123
          %v2163 = vunpack.c.l.b16 %v2124
          %v2164 = vunpack.c.l.b16 %v2125
          %v2165 = vunpack.c.l.b16 %v2126
          %v2166 = vunpack.c.l.b16 %v2127
          %v2167 = vpack.c.b16 %v2152, %v2151
          %v2168 = vpack.c.b16 %v2154, %v2153
          %v2169 = vpack.c.b16 %v2156, %v2155
          %v2170 = vpack.c.b16 %v2158, %v2157
          %v2171 = vpack.c.b16 %v2160, %v2159
          %v2172 = vpack.c.b16 %v2162, %v2161
          %v2173 = vpack.c.b16 %v2164, %v2163
          %v2174 = vpack.c.b16 %v2166, %v2165
          %2183 = vmatprep.subr.bf16.mxu0 0
          %2184 = vmatpush1.bf16.msra.mxu0 %v2174
          %2185 = vmatprep.subr.bf16.mxu0 0
          %2186 = vmatpush1.bf16.msra.mxu0 %v2173
          %2187 = vmatprep.subr.bf16.mxu0 0
          %2188 = vmatpush1.bf16.msra.mxu0 %v2172
          %2189 = vmatprep.subr.bf16.mxu0 0
          %2190 = vmatpush1.bf16.msra.mxu0 %v2171
          %2191 = vmatprep.subr.bf16.mxu0 0
          %2192 = vmatpush1.bf16.msra.mxu0 %v2170
          %2193 = vmatprep.subr.bf16.mxu0 0
          %2194 = vmatpush1.bf16.msra.mxu0 %v2169
          %2195 = vmatprep.subr.bf16.mxu0 0
          %2196 = vmatpush1.bf16.msra.mxu0 %v2168
          %2197 = vmatprep.subr.bf16.mxu0 0
          %2198 = vmatpush1.bf16.msra.mxu0 %v2167
          %2199 = vmatprep.subr.bf16.mxu0 0
          %2200 = vmatpush2.bf16.msra.mxu0 0
          %2201 = vmatprep.subr.bf16.mxu0 0
          %2202 = vmatpush2.bf16.msra.mxu0 0
          %2203 = vmatprep.subr.bf16.mxu0 0
          %2204 = vmatpush2.bf16.msra.mxu0 0
          %2205 = vmatprep.subr.bf16.mxu0 0
          %2206 = vmatpush2.bf16.msra.mxu0 0
          %2207 = vmatprep.subr.bf16.mxu0 0
          %2208 = vmatpush2.bf16.msra.mxu0 0
          %2209 = vmatprep.subr.bf16.mxu0 0
          %2210 = vmatpush2.bf16.msra.mxu0 0
          %2211 = vmatprep.subr.bf16.mxu0 0
          %2212 = vmatpush2.bf16.msra.mxu0 0
          %2213 = vmatprep.subr.bf16.mxu0 0
          %2214 = vmatpush2.bf16.msra.mxu0 0
          %2215 = vmatprep.mubr.bf16.mxu0 0
          %2216 = vmatmul.mubr.bf16.gmra.mxu0 %v2111
          %v2217 = vpop.f32.mrf.mxu0
          %v2218 = vadd.f32 %v2133, %v2217
          %v2219 = vpop.f32.mrf.mxu0
          %v2220 = vpop.f32.mrf.mxu0
          %v2221 = vpop.f32.mrf.mxu0
          %2222 = vdwg.mxu0
          %v2223 = vxor.u32 %v2218, 2147483648
          %v2224 = vmul.f32 %v2223, 1.442695
          %v2225 = vpow.pop %v2224
          %v2226 = vadd.f32 %v2225, 1.0
          %v2227 = vrcp.pop %v2226
          %v2228 = vmul.f32 1.0, %v2227
          %2229 = vst [vmem:[#allocation13] sm:$0xff] %v2228
        $region68: #{tpu_custom_call.1} parent=43 // pred_fallthru
          _
        // Predicated region
        $region69: #{tpu_custom_call.1} parent=43 // pred_check
          %p2230 = pneg %p186
        $region70: #{tpu_custom_call.1} parent=43 // pred_check_branch
          %2232 = sbr.rel (%p2230) target = $region72
        $region71: #{tpu_custom_call.1} parent=43 // pred_region
          %s2234 = ssub.s32 128, 128
          %2235 = vsyncadd [#allocation7], %s2234
          %s2236 = smul.addr %s27, 128
          %s2237 = scalar_lea.hbm %s6, %s2236
          %s2239 = sshll.u32 [#allocation13], 4
          %s2240 = int_to_ptr.vmem [resolvable:$true] %s2239
          %2242 = dma.vmem_to_hbm [thread:$0]  %s2240, 128, %s2237, [#allocation7]
        $region72: #{tpu_custom_call.1} parent=43 // pred_fallthru
          _
        // Predicated region
        $region73: #{tpu_custom_call.1} parent=43 // pred_check
          %p2243 = pneg %p186
        $region74: #{tpu_custom_call.1} parent=43 // pred_check_branch
          %2245 = sbr.rel (%p2243) target = $region76
        $region75: #{tpu_custom_call.1} parent=43 // pred_region
          %2246 = dma.done [#allocation7], 128
        $region76: #{tpu_custom_call.1} parent=43 // pred_fallthru
          _
      $region44: #{tpu_custom_call.1} parent=5 // pred_fallthru
        _
      %p2247 = scmp.le.s32.totalorder 2, %s18
      // Predicated region
      $region77: #{tpu_custom_call.1} parent=5 // pred_check
        %p2248 = pneg %p2247
      $region78: #{tpu_custom_call.1} parent=5 // pred_check_branch
        %2250 = sbr.rel (%p2248) target = $region80
      $region79: #{tpu_custom_call.1} parent=5 // pred_region
        %s2251 = ssub.s32 %s18, 2
      $region80: #{tpu_custom_call.1} parent=5 // pred_fallthru
        _
    $region6: #{tpu_custom_call.1} parent=1 // loop_footer
      %s22 = sadd.s32 1, %s18
    $region7: #{tpu_custom_call.1} parent=1 // loop_footer_branch
      %17 = sbr.rel target = $region3
    $region8: #{tpu_custom_call.1} parent=1 // loop_exit
      _
    %2252 = vsyncpa [#allocation6], 1
    %s2253 = scalar_lea.sflag [#allocation6], 1
    %2254 = vsyncpa %s2253, 1
    %2255 = vsyncpa [#allocation9], 1
    %2256 = vsyncpa [#allocation12], 1
    %2257 = vsyncpa [#allocation7], 1
    %s2258 = scalar_lea.sflag [#allocation7], 1
    %2259 = vsyncpa %s2258, 1

</llo_original>
